<compile_context>
chip_gen: v6e
topology: v6e:2x2x1
jax: 0.10.0
libtpu: 0.0.40
codegen_flags: <defaults>
</compile_context>

<pallas_src>
import jax
import jax.numpy as jnp
from jax import lax
from jax.experimental import pallas as pl
from jax.experimental.pallas import tpu as pltpu


def rnn_model_forward(x, w_ih, w_hh, b_ih, b_hh, *, chunk=8):
    """Pallas equivalent of RNNModel.forward (LSTM cell loop, state=None).

    x:    (B, T, I) float
    w_ih: (4H, I), w_hh: (4H, H), b_ih/b_hh: (4H,)   -- PyTorch LSTMCell params
    Returns (h_seq (B, T, H), (h_last (B, H), c_last (B, H))).
    """
    B, T, I = x.shape
    H = w_hh.shape[1]
    G = 4 * H

    x = x.astype(jnp.float32)
    w_ih = w_ih.astype(jnp.float32)
    whh_t = jnp.transpose(w_hh).astype(jnp.float32)          # (H, 4H)
    bias = (b_ih + b_hh).astype(jnp.float32)                 # (4H,)

    # ---- Hoisted input projection: one big parallel matmul (off the serial path).
    # gates_x[b, t, :] = x[b, t, :] @ W_ih^T + (b_ih + b_hh)
    gates_x = jnp.einsum("bti,gi->btg", x, w_ih,
                         preferred_element_type=jnp.float32) + bias   # (B, T, 4H)

    # ---- Chunking: time steps per grid iteration.
    if T <= chunk:
        chunk = T                       # single chunk: block time dim == full dim
    else:
        chunk = max(8, (chunk // 8) * 8)  # keep sublane block dim a multiple of 8
    T_pad = pl.cdiv(T, chunk) * chunk
    if T_pad != T:
        gates_x = jnp.pad(gates_x, ((0, 0), (0, T_pad - T), (0, 0)))
    n_chunks = T_pad // chunk
    needs_mask = (T_pad != T)

    def lstm_chunk_kernel(gx_ref, whh_ref, hseq_ref, c_last_ref, h_sc, c_sc):
        """One grid step == `chunk` LSTM time steps.

        gx_ref:     (B, chunk, 4H)  precomputed x@W_ih^T + bias for this chunk
        whh_ref:    (H, 4H)         W_hh^T (constant block)
        hseq_ref:   (B, chunk, H)   hidden states for this chunk (batch-first)
        c_last_ref: (B, H)          final cell state (written at last step only)
        h_sc, c_sc: (B, H)          VMEM-resident recurrent state across chunks
        """
        t = pl.program_id(0)

        @pl.when(t == 0)
        def _init():
            h_sc[...] = jnp.zeros_like(h_sc)
            c_sc[...] = jnp.zeros_like(c_sc)

        whh = whh_ref[...]          # (H, 4H), loaded once per chunk
        h = h_sc[...]               # (B, H)  -- carried in vregs inside the chunk
        c = c_sc[...]               # (B, H)

        # Fully unrolled straight-line time loop (static indices, h/c in regs).
        for j in range(chunk):
            gates = (jnp.dot(h, whh, preferred_element_type=jnp.float32)
                     + gx_ref[:, j, :])                    # (B, 4H)
            # PyTorch LSTMCell gate order: i, f, g, o
            i_g = jax.nn.sigmoid(gates[:, 0 * H:1 * H])
            f_g = jax.nn.sigmoid(gates[:, 1 * H:2 * H])
            g_g = jnp.tanh(gates[:, 2 * H:3 * H])
            o_g = jax.nn.sigmoid(gates[:, 3 * H:4 * H])
            c_new = f_g * c + i_g * g_g
            h_new = o_g * jnp.tanh(c_new)
            if needs_mask:                                  # tail-padding guard
                valid = (t * chunk + j) < T
                h_new = jnp.where(valid, h_new, h)
                c_new = jnp.where(valid, c_new, c)
            hseq_ref[:, j, :] = h_new.astype(hseq_ref.dtype)
            h, c = h_new, c_new

        h_sc[...] = h
        c_sc[...] = c

        @pl.when(t == pl.num_programs(0) - 1)
        def _final():
            c_last_ref[...] = c.astype(c_last_ref.dtype)

    h_seq_full, c_last = pl.pallas_call(
        lstm_chunk_kernel,
        out_shape=(
            jax.ShapeDtypeStruct((B, T_pad, H), jnp.float32),
            jax.ShapeDtypeStruct((B, H), jnp.float32),
        ),
        grid_spec=pltpu.PrefetchScalarGridSpec(
            num_scalar_prefetch=0,
            grid=(n_chunks,),
            in_specs=[
                pl.BlockSpec((B, chunk, G), lambda t: (0, t, 0)),   # gates_x chunk
                pl.BlockSpec((H, G), lambda t: (0, 0)),             # W_hh^T (resident)
            ],
            out_specs=(
                pl.BlockSpec((B, chunk, H), lambda t: (0, t, 0)),   # h_seq chunk
                pl.BlockSpec((B, H), lambda t: (0, 0)),             # c_last (resident)
            ),
            scratch_shapes=[
                pltpu.VMEM((B, H), jnp.float32),   # h state
                pltpu.VMEM((B, H), jnp.float32),   # c state
            ],
        ),
        compiler_params=pltpu.CompilerParams(
            dimension_semantics=("arbitrary",),    # recurrence: sequential over time
        ),
    )(gates_x, whh_t)

    h_seq = h_seq_full[:, :T, :] if needs_mask else h_seq_full
    h_last = h_seq[:, -1, :]
    return h_seq, (h_last, c_last)


def _reference_forward(x, w_ih, w_hh, b_ih, b_hh):
    """Plain-JAX reference mirroring torch.nn.LSTMCell loop (for validation)."""
    B, T, I = x.shape
    H = w_hh.shape[1]
    h = jnp.zeros((B, H), jnp.float32)
    c = jnp.zeros((B, H), jnp.float32)

    def step(carry, xt):
        h, c = carry
        gates = xt @ w_ih.T + b_ih + h @ w_hh.T + b_hh
        i = jax.nn.sigmoid(gates[:, 0 * H:1 * H])
        f = jax.nn.sigmoid(gates[:, 1 * H:2 * H])
        g = jnp.tanh(gates[:, 2 * H:3 * H])
        o = jax.nn.sigmoid(gates[:, 3 * H:4 * H])
        c_new = f * c + i * g
        h_new = o * jnp.tanh(c_new)
        return (h_new, c_new), h_new

    (h_last, c_last), h_seq = lax.scan(step, (h, c), jnp.transpose(x, (1, 0, 2)))
    return jnp.transpose(h_seq, (1, 0, 2)), (h_last, c_last)


def _run_and_check(B, T, I, H, seed=0):
    key = jax.random.PRNGKey(seed)
    kx, k1, k2, k3, k4 = jax.random.split(key, 5)
    scale = 1.0 / jnp.sqrt(jnp.float32(H))
    w_ih = jax.random.uniform(k1, (4 * H, I), jnp.float32, -scale, scale)
    w_hh = jax.random.uniform(k2, (4 * H, H), jnp.float32, -scale, scale)
    b_ih = jax.random.uniform(k3, (4 * H,), jnp.float32, -scale, scale)
    b_hh = jax.random.uniform(k4, (4 * H,), jnp.float32, -scale, scale)
    x = jax.random.normal(kx, (B, T, I), jnp.float32)

    h_seq, (h_last, c_last) = rnn_model_forward(x, w_ih, w_hh, b_ih, b_hh)
    jax.block_until_ready((h_seq, h_last, c_last))

    h_ref, (h_last_ref, c_last_ref) = _reference_forward(x, w_ih, w_hh, b_ih, b_hh)
    assert h_seq.shape == (B, T, H)
    assert h_last.shape == (B, H) and c_last.shape == (B, H)
    assert jnp.allclose(h_seq, h_ref, atol=1e-5)
    assert jnp.allclose(h_last, h_last_ref, atol=1e-5)
    assert jnp.allclose(c_last, c_last_ref, atol=1e-5)


if __name__ == "__main__":
    # Shapes implied by the module: batch=2, seq=8, input=4, hidden=32.
    _run_and_check(B=2, T=8, I=4, H=32)     # single chunk (grid=1)
    # Extra coverage: multi-chunk carry + ragged-tail masking path.
    _run_and_check(B=2, T=11, I=4, H=32)    # grid=2, padded tail
    print("KERNEL_OK")
</pallas_src>

<mosaic_0001>
module attributes {stable_mosaic.version = 11 : i64} {
  func.func @lstm_chunk_kernel(%arg0: i32, %arg1: memref<2x8x128xf32, #tpu.memory_space<vmem>>, %arg2: memref<32x128xf32, #tpu.memory_space<vmem>>, %arg3: memref<2x8x32xf32, #tpu.memory_space<vmem>>, %arg4: memref<2x32xf32, #tpu.memory_space<vmem>>, %arg5: memref<2x32xf32, #tpu.memory_space<vmem>>, %arg6: memref<2x32xf32, #tpu.memory_space<vmem>>) attributes {dimension_semantics = [#tpu.dimension_semantics<arbitrary>], iteration_bounds = array<i64: 1>, scalar_prefetch = 0 : i64, scratch_operands = 2 : i64, tpu.core_type = #tpu.core_type<tc>, window_params = [{transform_indices = @transform_0, window_bounds = array<i64: 2, 8, 128>}, {pipeline_mode = #tpu.pipeline_mode<synchronous>, transform_indices = @transform_1, window_bounds = array<i64: 32, 128>}, {transform_indices = @transform_2, window_bounds = array<i64: 2, 8, 32>}, {pipeline_mode = #tpu.pipeline_mode<synchronous>, transform_indices = @transform_3, window_bounds = array<i64: 2, 32>}]} {
    %c0_i32 = arith.constant 0 : i32
    %0 = arith.cmpi eq, %arg0, %c0_i32 : i32
    %1 = arith.extui %0 : i1 to i32
    %c0_i32_0 = arith.constant 0 : i32
    %2 = arith.cmpi ne, %1, %c0_i32_0 : i32
    scf.if %2 {
      %cst_84 = arith.constant 0.000000e+00 : f32
      %267 = vector.broadcast %cst_84 : f32 to vector<2x32xf32>
      %c0_85 = arith.constant 0 : index
      %c0_86 = arith.constant 0 : index
      %268 = vector.load %arg5[%c0_85, %c0_86] : memref<2x32xf32, #tpu.memory_space<vmem>>, vector<2x32xf32>
      tpu.vector_store %arg5[%c0_85, %c0_86], %267 {strides = array<i32>} : memref<2x32xf32, #tpu.memory_space<vmem>>, vector<2x32xf32>,
      %cst_87 = arith.constant 0.000000e+00 : f32
      %269 = vector.broadcast %cst_87 : f32 to vector<2x32xf32>
      %c0_88 = arith.constant 0 : index
      %c0_89 = arith.constant 0 : index
      %270 = vector.load %arg6[%c0_88, %c0_89] : memref<2x32xf32, #tpu.memory_space<vmem>>, vector<2x32xf32>
      tpu.vector_store %arg6[%c0_88, %c0_89], %269 {strides = array<i32>} : memref<2x32xf32, #tpu.memory_space<vmem>>, vector<2x32xf32>,
    } else {
    }
    %c0 = arith.constant 0 : index
    %c0_1 = arith.constant 0 : index
    %3 = vector.load %arg2[%c0, %c0_1] : memref<32x128xf32, #tpu.memory_space<vmem>>, vector<32x128xf32>
    %c0_2 = arith.constant 0 : index
    %c0_3 = arith.constant 0 : index
    %4 = vector.load %arg5[%c0_2, %c0_3] : memref<2x32xf32, #tpu.memory_space<vmem>>, vector<2x32xf32>
    %c0_4 = arith.constant 0 : index
    %c0_5 = arith.constant 0 : index
    %5 = vector.load %arg6[%c0_4, %c0_5] : memref<2x32xf32, #tpu.memory_space<vmem>>, vector<2x32xf32>
    %cst = arith.constant dense<0.000000e+00> : vector<2x128xf32>
    %6 = tpu.matmul %4, %3, %cst {dimension_numbers = #tpu.dot_dimension_numbers<[1], [0], [0], [1], [0, 0, 1, 1], [], []>} : vector<2x32xf32>, vector<32x128xf32>, vector<2x128xf32> -> vector<2x128xf32>
    %c0_6 = arith.constant 0 : index
    %c0_7 = arith.constant 0 : index
    %c0_8 = arith.constant 0 : index
    %7 = vector.load %arg1[%c0_6, %c0_7, %c0_8] : memref<2x8x128xf32, #tpu.memory_space<vmem>>, vector<2x1x128xf32>
    %8 = vector.shape_cast %7 : vector<2x1x128xf32> to vector<2x128xf32>
    %9 = arith.addf %6, %8 : vector<2x128xf32>
    %10 = vector.extract_strided_slice %9 {offsets = [0, 0], sizes = [2, 32], strides = [1, 1]} : vector<2x128xf32> to vector<2x32xf32>
    %11 = arith.negf %10 : vector<2x32xf32>
    %12 = math.exp %11 : vector<2x32xf32>
    %cst_9 = arith.constant 1.000000e+00 : f32
    %13 = vector.broadcast %cst_9 : f32 to vector<2x32xf32>
    %14 = arith.addf %13, %12 : vector<2x32xf32>
    %15 = arith.divf %13, %14 : vector<2x32xf32>
    %16 = vector.extract_strided_slice %9 {offsets = [0, 32], sizes = [2, 32], strides = [1, 1]} : vector<2x128xf32> to vector<2x32xf32>
    %17 = arith.negf %16 : vector<2x32xf32>
    %18 = math.exp %17 : vector<2x32xf32>
    %cst_10 = arith.constant 1.000000e+00 : f32
    %19 = vector.broadcast %cst_10 : f32 to vector<2x32xf32>
    %20 = arith.addf %19, %18 : vector<2x32xf32>
    %21 = arith.divf %19, %20 : vector<2x32xf32>
    %22 = vector.extract_strided_slice %9 {offsets = [0, 64], sizes = [2, 32], strides = [1, 1]} : vector<2x128xf32> to vector<2x32xf32>
    %23 = math.tanh %22 : vector<2x32xf32>
    %24 = vector.extract_strided_slice %9 {offsets = [0, 96], sizes = [2, 32], strides = [1, 1]} : vector<2x128xf32> to vector<2x32xf32>
    %25 = arith.negf %24 : vector<2x32xf32>
    %26 = math.exp %25 : vector<2x32xf32>
    %cst_11 = arith.constant 1.000000e+00 : f32
    %27 = vector.broadcast %cst_11 : f32 to vector<2x32xf32>
    %28 = arith.addf %27, %26 : vector<2x32xf32>
    %29 = arith.divf %27, %28 : vector<2x32xf32>
    %30 = arith.mulf %21, %5 : vector<2x32xf32>
    %31 = arith.mulf %15, %23 : vector<2x32xf32>
    %32 = arith.addf %30, %31 : vector<2x32xf32>
    %33 = math.tanh %32 : vector<2x32xf32>
    %34 = arith.mulf %29, %33 : vector<2x32xf32>
    %c0_12 = arith.constant 0 : index
    %c0_13 = arith.constant 0 : index
    %c0_14 = arith.constant 0 : index
    %35 = vector.load %arg3[%c0_12, %c0_13, %c0_14] : memref<2x8x32xf32, #tpu.memory_space<vmem>>, vector<2x1x32xf32>
    %36 = vector.shape_cast %35 : vector<2x1x32xf32> to vector<2x32xf32>
    %37 = vector.shape_cast %34 : vector<2x32xf32> to vector<2x1x32xf32>
    tpu.vector_store %arg3[%c0_12, %c0_13, %c0_14], %37 {strides = array<i32>} : memref<2x8x32xf32, #tpu.memory_space<vmem>>, vector<2x1x32xf32>,
    %cst_15 = arith.constant dense<0.000000e+00> : vector<2x128xf32>
    %38 = tpu.matmul %34, %3, %cst_15 {dimension_numbers = #tpu.dot_dimension_numbers<[1], [0], [0], [1], [0, 0, 1, 1], [], []>} : vector<2x32xf32>, vector<32x128xf32>, vector<2x128xf32> -> vector<2x128xf32>
    %c0_16 = arith.constant 0 : index
    %c1 = arith.constant 1 : index
    %c0_17 = arith.constant 0 : index
    %39 = vector.load %arg1[%c0_16, %c1, %c0_17] : memref<2x8x128xf32, #tpu.memory_space<vmem>>, vector<2x1x128xf32>
    %40 = vector.shape_cast %39 : vector<2x1x128xf32> to vector<2x128xf32>
    %41 = arith.addf %38, %40 : vector<2x128xf32>
    %42 = vector.extract_strided_slice %41 {offsets = [0, 0], sizes = [2, 32], strides = [1, 1]} : vector<2x128xf32> to vector<2x32xf32>
    %43 = arith.negf %42 : vector<2x32xf32>
    %44 = math.exp %43 : vector<2x32xf32>
    %cst_18 = arith.constant 1.000000e+00 : f32
    %45 = vector.broadcast %cst_18 : f32 to vector<2x32xf32>
    %46 = arith.addf %45, %44 : vector<2x32xf32>
    %47 = arith.divf %45, %46 : vector<2x32xf32>
    %48 = vector.extract_strided_slice %41 {offsets = [0, 32], sizes = [2, 32], strides = [1, 1]} : vector<2x128xf32> to vector<2x32xf32>
    %49 = arith.negf %48 : vector<2x32xf32>
    %50 = math.exp %49 : vector<2x32xf32>
    %cst_19 = arith.constant 1.000000e+00 : f32
    %51 = vector.broadcast %cst_19 : f32 to vector<2x32xf32>
    %52 = arith.addf %51, %50 : vector<2x32xf32>
    %53 = arith.divf %51, %52 : vector<2x32xf32>
    %54 = vector.extract_strided_slice %41 {offsets = [0, 64], sizes = [2, 32], strides = [1, 1]} : vector<2x128xf32> to vector<2x32xf32>
    %55 = math.tanh %54 : vector<2x32xf32>
    %56 = vector.extract_strided_slice %41 {offsets = [0, 96], sizes = [2, 32], strides = [1, 1]} : vector<2x128xf32> to vector<2x32xf32>
    %57 = arith.negf %56 : vector<2x32xf32>
    %58 = math.exp %57 : vector<2x32xf32>
    %cst_20 = arith.constant 1.000000e+00 : f32
    %59 = vector.broadcast %cst_20 : f32 to vector<2x32xf32>
    %60 = arith.addf %59, %58 : vector<2x32xf32>
    %61 = arith.divf %59, %60 : vector<2x32xf32>
    %62 = arith.mulf %53, %32 : vector<2x32xf32>
    %63 = arith.mulf %47, %55 : vector<2x32xf32>
    %64 = arith.addf %62, %63 : vector<2x32xf32>
    %65 = math.tanh %64 : vector<2x32xf32>
    %66 = arith.mulf %61, %65 : vector<2x32xf32>
    %c0_21 = arith.constant 0 : index
    %c1_22 = arith.constant 1 : index
    %c0_23 = arith.constant 0 : index
    %67 = vector.load %arg3[%c0_21, %c1_22, %c0_23] : memref<2x8x32xf32, #tpu.memory_space<vmem>>, vector<2x1x32xf32>
    %68 = vector.shape_cast %67 : vector<2x1x32xf32> to vector<2x32xf32>
    %69 = vector.shape_cast %66 : vector<2x32xf32> to vector<2x1x32xf32>
    tpu.vector_store %arg3[%c0_21, %c1_22, %c0_23], %69 {strides = array<i32>} : memref<2x8x32xf32, #tpu.memory_space<vmem>>, vector<2x1x32xf32>,
    %cst_24 = arith.constant dense<0.000000e+00> : vector<2x128xf32>
    %70 = tpu.matmul %66, %3, %cst_24 {dimension_numbers = #tpu.dot_dimension_numbers<[1], [0], [0], [1], [0, 0, 1, 1], [], []>} : vector<2x32xf32>, vector<32x128xf32>, vector<2x128xf32> -> vector<2x128xf32>
    %c0_25 = arith.constant 0 : index
    %c2 = arith.constant 2 : index
    %c0_26 = arith.constant 0 : index
    %71 = vector.load %arg1[%c0_25, %c2, %c0_26] : memref<2x8x128xf32, #tpu.memory_space<vmem>>, vector<2x1x128xf32>
    %72 = vector.shape_cast %71 : vector<2x1x128xf32> to vector<2x128xf32>
    %73 = arith.addf %70, %72 : vector<2x128xf32>
    %74 = vector.extract_strided_slice %73 {offsets = [0, 0], sizes = [2, 32], strides = [1, 1]} : vector<2x128xf32> to vector<2x32xf32>
    %75 = arith.negf %74 : vector<2x32xf32>
    %76 = math.exp %75 : vector<2x32xf32>
    %cst_27 = arith.constant 1.000000e+00 : f32
    %77 = vector.broadcast %cst_27 : f32 to vector<2x32xf32>
    %78 = arith.addf %77, %76 : vector<2x32xf32>
    %79 = arith.divf %77, %78 : vector<2x32xf32>
    %80 = vector.extract_strided_slice %73 {offsets = [0, 32], sizes = [2, 32], strides = [1, 1]} : vector<2x128xf32> to vector<2x32xf32>
    %81 = arith.negf %80 : vector<2x32xf32>
    %82 = math.exp %81 : vector<2x32xf32>
    %cst_28 = arith.constant 1.000000e+00 : f32
    %83 = vector.broadcast %cst_28 : f32 to vector<2x32xf32>
    %84 = arith.addf %83, %82 : vector<2x32xf32>
    %85 = arith.divf %83, %84 : vector<2x32xf32>
    %86 = vector.extract_strided_slice %73 {offsets = [0, 64], sizes = [2, 32], strides = [1, 1]} : vector<2x128xf32> to vector<2x32xf32>
    %87 = math.tanh %86 : vector<2x32xf32>
    %88 = vector.extract_strided_slice %73 {offsets = [0, 96], sizes = [2, 32], strides = [1, 1]} : vector<2x128xf32> to vector<2x32xf32>
    %89 = arith.negf %88 : vector<2x32xf32>
    %90 = math.exp %89 : vector<2x32xf32>
    %cst_29 = arith.constant 1.000000e+00 : f32
    %91 = vector.broadcast %cst_29 : f32 to vector<2x32xf32>
    %92 = arith.addf %91, %90 : vector<2x32xf32>
    %93 = arith.divf %91, %92 : vector<2x32xf32>
    %94 = arith.mulf %85, %64 : vector<2x32xf32>
    %95 = arith.mulf %79, %87 : vector<2x32xf32>
    %96 = arith.addf %94, %95 : vector<2x32xf32>
    %97 = math.tanh %96 : vector<2x32xf32>
    %98 = arith.mulf %93, %97 : vector<2x32xf32>
    %c0_30 = arith.constant 0 : index
    %c2_31 = arith.constant 2 : index
    %c0_32 = arith.constant 0 : index
    %99 = vector.load %arg3[%c0_30, %c2_31, %c0_32] : memref<2x8x32xf32, #tpu.memory_space<vmem>>, vector<2x1x32xf32>
    %100 = vector.shape_cast %99 : vector<2x1x32xf32> to vector<2x32xf32>
    %101 = vector.shape_cast %98 : vector<2x32xf32> to vector<2x1x32xf32>
    tpu.vector_store %arg3[%c0_30, %c2_31, %c0_32], %101 {strides = array<i32>} : memref<2x8x32xf32, #tpu.memory_space<vmem>>, vector<2x1x32xf32>,
    %cst_33 = arith.constant dense<0.000000e+00> : vector<2x128xf32>
    %102 = tpu.matmul %98, %3, %cst_33 {dimension_numbers = #tpu.dot_dimension_numbers<[1], [0], [0], [1], [0, 0, 1, 1], [], []>} : vector<2x32xf32>, vector<32x128xf32>, vector<2x128xf32> -> vector<2x128xf32>
    %c0_34 = arith.constant 0 : index
    %c3 = arith.constant 3 : index
    %c0_35 = arith.constant 0 : index
    %103 = vector.load %arg1[%c0_34, %c3, %c0_35] : memref<2x8x128xf32, #tpu.memory_space<vmem>>, vector<2x1x128xf32>
    %104 = vector.shape_cast %103 : vector<2x1x128xf32> to vector<2x128xf32>
    %105 = arith.addf %102, %104 : vector<2x128xf32>
    %106 = vector.extract_strided_slice %105 {offsets = [0, 0], sizes = [2, 32], strides = [1, 1]} : vector<2x128xf32> to vector<2x32xf32>
    %107 = arith.negf %106 : vector<2x32xf32>
    %108 = math.exp %107 : vector<2x32xf32>
    %cst_36 = arith.constant 1.000000e+00 : f32
    %109 = vector.broadcast %cst_36 : f32 to vector<2x32xf32>
    %110 = arith.addf %109, %108 : vector<2x32xf32>
    %111 = arith.divf %109, %110 : vector<2x32xf32>
    %112 = vector.extract_strided_slice %105 {offsets = [0, 32], sizes = [2, 32], strides = [1, 1]} : vector<2x128xf32> to vector<2x32xf32>
    %113 = arith.negf %112 : vector<2x32xf32>
    %114 = math.exp %113 : vector<2x32xf32>
    %cst_37 = arith.constant 1.000000e+00 : f32
    %115 = vector.broadcast %cst_37 : f32 to vector<2x32xf32>
    %116 = arith.addf %115, %114 : vector<2x32xf32>
    %117 = arith.divf %115, %116 : vector<2x32xf32>
    %118 = vector.extract_strided_slice %105 {offsets = [0, 64], sizes = [2, 32], strides = [1, 1]} : vector<2x128xf32> to vector<2x32xf32>
    %119 = math.tanh %118 : vector<2x32xf32>
    %120 = vector.extract_strided_slice %105 {offsets = [0, 96], sizes = [2, 32], strides = [1, 1]} : vector<2x128xf32> to vector<2x32xf32>
    %121 = arith.negf %120 : vector<2x32xf32>
    %122 = math.exp %121 : vector<2x32xf32>
    %cst_38 = arith.constant 1.000000e+00 : f32
    %123 = vector.broadcast %cst_38 : f32 to vector<2x32xf32>
    %124 = arith.addf %123, %122 : vector<2x32xf32>
    %125 = arith.divf %123, %124 : vector<2x32xf32>
    %126 = arith.mulf %117, %96 : vector<2x32xf32>
    %127 = arith.mulf %111, %119 : vector<2x32xf32>
    %128 = arith.addf %126, %127 : vector<2x32xf32>
    %129 = math.tanh %128 : vector<2x32xf32>
    %130 = arith.mulf %125, %129 : vector<2x32xf32>
    %c0_39 = arith.constant 0 : index
    %c3_40 = arith.constant 3 : index
    %c0_41 = arith.constant 0 : index
    %131 = vector.load %arg3[%c0_39, %c3_40, %c0_41] : memref<2x8x32xf32, #tpu.memory_space<vmem>>, vector<2x1x32xf32>
    %132 = vector.shape_cast %131 : vector<2x1x32xf32> to vector<2x32xf32>
    %133 = vector.shape_cast %130 : vector<2x32xf32> to vector<2x1x32xf32>
    tpu.vector_store %arg3[%c0_39, %c3_40, %c0_41], %133 {strides = array<i32>} : memref<2x8x32xf32, #tpu.memory_space<vmem>>, vector<2x1x32xf32>,
    %cst_42 = arith.constant dense<0.000000e+00> : vector<2x128xf32>
    %134 = tpu.matmul %130, %3, %cst_42 {dimension_numbers = #tpu.dot_dimension_numbers<[1], [0], [0], [1], [0, 0, 1, 1], [], []>} : vector<2x32xf32>, vector<32x128xf32>, vector<2x128xf32> -> vector<2x128xf32>
    %c0_43 = arith.constant 0 : index
    %c4 = arith.constant 4 : index
    %c0_44 = arith.constant 0 : index
    %135 = vector.load %arg1[%c0_43, %c4, %c0_44] : memref<2x8x128xf32, #tpu.memory_space<vmem>>, vector<2x1x128xf32>
    %136 = vector.shape_cast %135 : vector<2x1x128xf32> to vector<2x128xf32>
    %137 = arith.addf %134, %136 : vector<2x128xf32>
    %138 = vector.extract_strided_slice %137 {offsets = [0, 0], sizes = [2, 32], strides = [1, 1]} : vector<2x128xf32> to vector<2x32xf32>
    %139 = arith.negf %138 : vector<2x32xf32>
    %140 = math.exp %139 : vector<2x32xf32>
    %cst_45 = arith.constant 1.000000e+00 : f32
    %141 = vector.broadcast %cst_45 : f32 to vector<2x32xf32>
    %142 = arith.addf %141, %140 : vector<2x32xf32>
    %143 = arith.divf %141, %142 : vector<2x32xf32>
    %144 = vector.extract_strided_slice %137 {offsets = [0, 32], sizes = [2, 32], strides = [1, 1]} : vector<2x128xf32> to vector<2x32xf32>
    %145 = arith.negf %144 : vector<2x32xf32>
    %146 = math.exp %145 : vector<2x32xf32>
    %cst_46 = arith.constant 1.000000e+00 : f32
    %147 = vector.broadcast %cst_46 : f32 to vector<2x32xf32>
    %148 = arith.addf %147, %146 : vector<2x32xf32>
    %149 = arith.divf %147, %148 : vector<2x32xf32>
    %150 = vector.extract_strided_slice %137 {offsets = [0, 64], sizes = [2, 32], strides = [1, 1]} : vector<2x128xf32> to vector<2x32xf32>
    %151 = math.tanh %150 : vector<2x32xf32>
    %152 = vector.extract_strided_slice %137 {offsets = [0, 96], sizes = [2, 32], strides = [1, 1]} : vector<2x128xf32> to vector<2x32xf32>
    %153 = arith.negf %152 : vector<2x32xf32>
    %154 = math.exp %153 : vector<2x32xf32>
    %cst_47 = arith.constant 1.000000e+00 : f32
    %155 = vector.broadcast %cst_47 : f32 to vector<2x32xf32>
    %156 = arith.addf %155, %154 : vector<2x32xf32>
    %157 = arith.divf %155, %156 : vector<2x32xf32>
    %158 = arith.mulf %149, %128 : vector<2x32xf32>
    %159 = arith.mulf %143, %151 : vector<2x32xf32>
    %160 = arith.addf %158, %159 : vector<2x32xf32>
    %161 = math.tanh %160 : vector<2x32xf32>
    %162 = arith.mulf %157, %161 : vector<2x32xf32>
    %c0_48 = arith.constant 0 : index
    %c4_49 = arith.constant 4 : index
    %c0_50 = arith.constant 0 : index
    %163 = vector.load %arg3[%c0_48, %c4_49, %c0_50] : memref<2x8x32xf32, #tpu.memory_space<vmem>>, vector<2x1x32xf32>
    %164 = vector.shape_cast %163 : vector<2x1x32xf32> to vector<2x32xf32>
    %165 = vector.shape_cast %162 : vector<2x32xf32> to vector<2x1x32xf32>
    tpu.vector_store %arg3[%c0_48, %c4_49, %c0_50], %165 {strides = array<i32>} : memref<2x8x32xf32, #tpu.memory_space<vmem>>, vector<2x1x32xf32>,
    %cst_51 = arith.constant dense<0.000000e+00> : vector<2x128xf32>
    %166 = tpu.matmul %162, %3, %cst_51 {dimension_numbers = #tpu.dot_dimension_numbers<[1], [0], [0], [1], [0, 0, 1, 1], [], []>} : vector<2x32xf32>, vector<32x128xf32>, vector<2x128xf32> -> vector<2x128xf32>
    %c0_52 = arith.constant 0 : index
    %c5 = arith.constant 5 : index
    %c0_53 = arith.constant 0 : index
    %167 = vector.load %arg1[%c0_52, %c5, %c0_53] : memref<2x8x128xf32, #tpu.memory_space<vmem>>, vector<2x1x128xf32>
    %168 = vector.shape_cast %167 : vector<2x1x128xf32> to vector<2x128xf32>
    %169 = arith.addf %166, %168 : vector<2x128xf32>
    %170 = vector.extract_strided_slice %169 {offsets = [0, 0], sizes = [2, 32], strides = [1, 1]} : vector<2x128xf32> to vector<2x32xf32>
    %171 = arith.negf %170 : vector<2x32xf32>
    %172 = math.exp %171 : vector<2x32xf32>
    %cst_54 = arith.constant 1.000000e+00 : f32
    %173 = vector.broadcast %cst_54 : f32 to vector<2x32xf32>
    %174 = arith.addf %173, %172 : vector<2x32xf32>
    %175 = arith.divf %173, %174 : vector<2x32xf32>
    %176 = vector.extract_strided_slice %169 {offsets = [0, 32], sizes = [2, 32], strides = [1, 1]} : vector<2x128xf32> to vector<2x32xf32>
    %177 = arith.negf %176 : vector<2x32xf32>
    %178 = math.exp %177 : vector<2x32xf32>
    %cst_55 = arith.constant 1.000000e+00 : f32
    %179 = vector.broadcast %cst_55 : f32 to vector<2x32xf32>
    %180 = arith.addf %179, %178 : vector<2x32xf32>
    %181 = arith.divf %179, %180 : vector<2x32xf32>
    %182 = vector.extract_strided_slice %169 {offsets = [0, 64], sizes = [2, 32], strides = [1, 1]} : vector<2x128xf32> to vector<2x32xf32>
    %183 = math.tanh %182 : vector<2x32xf32>
    %184 = vector.extract_strided_slice %169 {offsets = [0, 96], sizes = [2, 32], strides = [1, 1]} : vector<2x128xf32> to vector<2x32xf32>
    %185 = arith.negf %184 : vector<2x32xf32>
    %186 = math.exp %185 : vector<2x32xf32>
    %cst_56 = arith.constant 1.000000e+00 : f32
    %187 = vector.broadcast %cst_56 : f32 to vector<2x32xf32>
    %188 = arith.addf %187, %186 : vector<2x32xf32>
    %189 = arith.divf %187, %188 : vector<2x32xf32>
    %190 = arith.mulf %181, %160 : vector<2x32xf32>
    %191 = arith.mulf %175, %183 : vector<2x32xf32>
    %192 = arith.addf %190, %191 : vector<2x32xf32>
    %193 = math.tanh %192 : vector<2x32xf32>
    %194 = arith.mulf %189, %193 : vector<2x32xf32>
    %c0_57 = arith.constant 0 : index
    %c5_58 = arith.constant 5 : index
    %c0_59 = arith.constant 0 : index
    %195 = vector.load %arg3[%c0_57, %c5_58, %c0_59] : memref<2x8x32xf32, #tpu.memory_space<vmem>>, vector<2x1x32xf32>
    %196 = vector.shape_cast %195 : vector<2x1x32xf32> to vector<2x32xf32>
    %197 = vector.shape_cast %194 : vector<2x32xf32> to vector<2x1x32xf32>
    tpu.vector_store %arg3[%c0_57, %c5_58, %c0_59], %197 {strides = array<i32>} : memref<2x8x32xf32, #tpu.memory_space<vmem>>, vector<2x1x32xf32>,
    %cst_60 = arith.constant dense<0.000000e+00> : vector<2x128xf32>
    %198 = tpu.matmul %194, %3, %cst_60 {dimension_numbers = #tpu.dot_dimension_numbers<[1], [0], [0], [1], [0, 0, 1, 1], [], []>} : vector<2x32xf32>, vector<32x128xf32>, vector<2x128xf32> -> vector<2x128xf32>
    %c0_61 = arith.constant 0 : index
    %c6 = arith.constant 6 : index
    %c0_62 = arith.constant 0 : index
    %199 = vector.load %arg1[%c0_61, %c6, %c0_62] : memref<2x8x128xf32, #tpu.memory_space<vmem>>, vector<2x1x128xf32>
    %200 = vector.shape_cast %199 : vector<2x1x128xf32> to vector<2x128xf32>
    %201 = arith.addf %198, %200 : vector<2x128xf32>
    %202 = vector.extract_strided_slice %201 {offsets = [0, 0], sizes = [2, 32], strides = [1, 1]} : vector<2x128xf32> to vector<2x32xf32>
    %203 = arith.negf %202 : vector<2x32xf32>
    %204 = math.exp %203 : vector<2x32xf32>
    %cst_63 = arith.constant 1.000000e+00 : f32
    %205 = vector.broadcast %cst_63 : f32 to vector<2x32xf32>
    %206 = arith.addf %205, %204 : vector<2x32xf32>
    %207 = arith.divf %205, %206 : vector<2x32xf32>
    %208 = vector.extract_strided_slice %201 {offsets = [0, 32], sizes = [2, 32], strides = [1, 1]} : vector<2x128xf32> to vector<2x32xf32>
    %209 = arith.negf %208 : vector<2x32xf32>
    %210 = math.exp %209 : vector<2x32xf32>
    %cst_64 = arith.constant 1.000000e+00 : f32
    %211 = vector.broadcast %cst_64 : f32 to vector<2x32xf32>
    %212 = arith.addf %211, %210 : vector<2x32xf32>
    %213 = arith.divf %211, %212 : vector<2x32xf32>
    %214 = vector.extract_strided_slice %201 {offsets = [0, 64], sizes = [2, 32], strides = [1, 1]} : vector<2x128xf32> to vector<2x32xf32>
    %215 = math.tanh %214 : vector<2x32xf32>
    %216 = vector.extract_strided_slice %201 {offsets = [0, 96], sizes = [2, 32], strides = [1, 1]} : vector<2x128xf32> to vector<2x32xf32>
    %217 = arith.negf %216 : vector<2x32xf32>
    %218 = math.exp %217 : vector<2x32xf32>
    %cst_65 = arith.constant 1.000000e+00 : f32
    %219 = vector.broadcast %cst_65 : f32 to vector<2x32xf32>
    %220 = arith.addf %219, %218 : vector<2x32xf32>
    %221 = arith.divf %219, %220 : vector<2x32xf32>
    %222 = arith.mulf %213, %192 : vector<2x32xf32>
    %223 = arith.mulf %207, %215 : vector<2x32xf32>
    %224 = arith.addf %222, %223 : vector<2x32xf32>
    %225 = math.tanh %224 : vector<2x32xf32>
    %226 = arith.mulf %221, %225 : vector<2x32xf32>
    %c0_66 = arith.constant 0 : index
    %c6_67 = arith.constant 6 : index
    %c0_68 = arith.constant 0 : index
    %227 = vector.load %arg3[%c0_66, %c6_67, %c0_68] : memref<2x8x32xf32, #tpu.memory_space<vmem>>, vector<2x1x32xf32>
    %228 = vector.shape_cast %227 : vector<2x1x32xf32> to vector<2x32xf32>
    %229 = vector.shape_cast %226 : vector<2x32xf32> to vector<2x1x32xf32>
    tpu.vector_store %arg3[%c0_66, %c6_67, %c0_68], %229 {strides = array<i32>} : memref<2x8x32xf32, #tpu.memory_space<vmem>>, vector<2x1x32xf32>,
    %cst_69 = arith.constant dense<0.000000e+00> : vector<2x128xf32>
    %230 = tpu.matmul %226, %3, %cst_69 {dimension_numbers = #tpu.dot_dimension_numbers<[1], [0], [0], [1], [0, 0, 1, 1], [], []>} : vector<2x32xf32>, vector<32x128xf32>, vector<2x128xf32> -> vector<2x128xf32>
    %c0_70 = arith.constant 0 : index
    %c7 = arith.constant 7 : index
    %c0_71 = arith.constant 0 : index
    %231 = vector.load %arg1[%c0_70, %c7, %c0_71] : memref<2x8x128xf32, #tpu.memory_space<vmem>>, vector<2x1x128xf32>
    %232 = vector.shape_cast %231 : vector<2x1x128xf32> to vector<2x128xf32>
    %233 = arith.addf %230, %232 : vector<2x128xf32>
    %234 = vector.extract_strided_slice %233 {offsets = [0, 0], sizes = [2, 32], strides = [1, 1]} : vector<2x128xf32> to vector<2x32xf32>
    %235 = arith.negf %234 : vector<2x32xf32>
    %236 = math.exp %235 : vector<2x32xf32>
    %cst_72 = arith.constant 1.000000e+00 : f32
    %237 = vector.broadcast %cst_72 : f32 to vector<2x32xf32>
    %238 = arith.addf %237, %236 : vector<2x32xf32>
    %239 = arith.divf %237, %238 : vector<2x32xf32>
    %240 = vector.extract_strided_slice %233 {offsets = [0, 32], sizes = [2, 32], strides = [1, 1]} : vector<2x128xf32> to vector<2x32xf32>
    %241 = arith.negf %240 : vector<2x32xf32>
    %242 = math.exp %241 : vector<2x32xf32>
    %cst_73 = arith.constant 1.000000e+00 : f32
    %243 = vector.broadcast %cst_73 : f32 to vector<2x32xf32>
    %244 = arith.addf %243, %242 : vector<2x32xf32>
    %245 = arith.divf %243, %244 : vector<2x32xf32>
    %246 = vector.extract_strided_slice %233 {offsets = [0, 64], sizes = [2, 32], strides = [1, 1]} : vector<2x128xf32> to vector<2x32xf32>
    %247 = math.tanh %246 : vector<2x32xf32>
    %248 = vector.extract_strided_slice %233 {offsets = [0, 96], sizes = [2, 32], strides = [1, 1]} : vector<2x128xf32> to vector<2x32xf32>
    %249 = arith.negf %248 : vector<2x32xf32>
    %250 = math.exp %249 : vector<2x32xf32>
    %cst_74 = arith.constant 1.000000e+00 : f32
    %251 = vector.broadcast %cst_74 : f32 to vector<2x32xf32>
    %252 = arith.addf %251, %250 : vector<2x32xf32>
    %253 = arith.divf %251, %252 : vector<2x32xf32>
    %254 = arith.mulf %245, %224 : vector<2x32xf32>
    %255 = arith.mulf %239, %247 : vector<2x32xf32>
    %256 = arith.addf %254, %255 : vector<2x32xf32>
    %257 = math.tanh %256 : vector<2x32xf32>
    %258 = arith.mulf %253, %257 : vector<2x32xf32>
    %c0_75 = arith.constant 0 : index
    %c7_76 = arith.constant 7 : index
    %c0_77 = arith.constant 0 : index
    %259 = vector.load %arg3[%c0_75, %c7_76, %c0_77] : memref<2x8x32xf32, #tpu.memory_space<vmem>>, vector<2x1x32xf32>
    %260 = vector.shape_cast %259 : vector<2x1x32xf32> to vector<2x32xf32>
    %261 = vector.shape_cast %258 : vector<2x32xf32> to vector<2x1x32xf32>
    tpu.vector_store %arg3[%c0_75, %c7_76, %c0_77], %261 {strides = array<i32>} : memref<2x8x32xf32, #tpu.memory_space<vmem>>, vector<2x1x32xf32>,
    %c0_78 = arith.constant 0 : index
    %c0_79 = arith.constant 0 : index
    %262 = vector.load %arg5[%c0_78, %c0_79] : memref<2x32xf32, #tpu.memory_space<vmem>>, vector<2x32xf32>
    tpu.vector_store %arg5[%c0_78, %c0_79], %258 {strides = array<i32>} : memref<2x32xf32, #tpu.memory_space<vmem>>, vector<2x32xf32>,
    %c0_80 = arith.constant 0 : index
    %c0_81 = arith.constant 0 : index
    %263 = vector.load %arg6[%c0_80, %c0_81] : memref<2x32xf32, #tpu.memory_space<vmem>>, vector<2x32xf32>
    tpu.vector_store %arg6[%c0_80, %c0_81], %256 {strides = array<i32>} : memref<2x32xf32, #tpu.memory_space<vmem>>, vector<2x32xf32>,
    %c0_i32_82 = arith.constant 0 : i32
    %264 = arith.cmpi eq, %arg0, %c0_i32_82 : i32
    %265 = arith.extui %264 : i1 to i32
    %c0_i32_83 = arith.constant 0 : i32
    %266 = arith.cmpi ne, %265, %c0_i32_83 : i32
    scf.if %266 {
      %c0_84 = arith.constant 0 : index
      %c0_85 = arith.constant 0 : index
      %267 = vector.load %arg4[%c0_84, %c0_85] : memref<2x32xf32, #tpu.memory_space<vmem>>, vector<2x32xf32>
      tpu.vector_store %arg4[%c0_84, %c0_85], %256 {strides = array<i32>} : memref<2x32xf32, #tpu.memory_space<vmem>>, vector<2x32xf32>,
    } else {
    }
    return
  }
  func.func @transform_0(%arg0: i32) -> (i32, i32, i32) {
    %c0_i32 = arith.constant 0 : i32
    %c0_i32_0 = arith.constant 0 : i32
    %c0_i32_1 = arith.constant 0 : i32
    return %c0_i32, %arg0, %c0_i32_0 : i32, i32, i32
  }
  func.func @transform_1(%arg0: i32) -> (i32, i32) {
    %c0_i32 = arith.constant 0 : i32
    %c0_i32_0 = arith.constant 0 : i32
    %c0_i32_1 = arith.constant 0 : i32
    return %c0_i32, %c0_i32_0 : i32, i32
  }
  func.func @transform_2(%arg0: i32) -> (i32, i32, i32) {
    %c0_i32 = arith.constant 0 : i32
    %c0_i32_0 = arith.constant 0 : i32
    %c0_i32_1 = arith.constant 0 : i32
    return %c0_i32, %arg0, %c0_i32_0 : i32, i32, i32
  }
  func.func @transform_3(%arg0: i32) -> (i32, i32) {
    %c0_i32 = arith.constant 0 : i32
    %c0_i32_0 = arith.constant 0 : i32
    %c0_i32_1 = arith.constant 0 : i32
    return %c0_i32, %c0_i32_0 : i32, i32
  }
}

</mosaic_0001>

<llo_original>
// kernel: tpu_custom_call.1
$region0: #{tpu_custom_call.1}
  #allocation0 [shape = 'u32[]', space=smem, size = 0x4, offset = 0x4, fixed_abs, tag = 'smem constant byte address 0x4 - core index']
  #allocation1 [shape = 'u32[144,128]{1,0:T(1,128)}', space=vmem, size = 0x12000, scoped, tag = 'internal scratch']
  #allocation2 [shape = 'f32[2,32]{1,0:T(2,128)}', space=vmem, size = 0x400, scoped, tag = 'scratch operand']
  #allocation3 [shape = 'f32[2,32]{1,0:T(2,128)}', space=vmem, size = 0x400, scoped, tag = 'scratch operand']
  %s0 = inlined_call_operand.hbm [shape: f32[2,8,128], index: 0, kind: input, shape index: {}]
  %s1 = inlined_call_operand.hbm [shape: f32[32,128], index: 1, kind: input, shape index: {}]
  %s2 = inlined_call_operand.hbm [shape: f32[2,8,32], index: 2, kind: output, shape index: {0}]
  %s3 = inlined_call_operand.hbm [shape: f32[2,32], index: 3, kind: output, shape index: {1}]
  %4 = xla_tuple %s2, %s3
  %s5 = sld [smem:[#allocation0]]
  $region42: #{tpu_custom_call.1} parent=0
    _
  %s7 = ssub.s32 1, %s5
  %s8 = scalar_select 0, %s7, %s5
  $region1: #{tpu_custom_call.1} parent=0
    #allocation4 [shape = 'u8[8192]{0}', space=vmem, size = 0x2000, scoped, tag = 'input window, operand 0, single buffered']
    #allocation5 [shape = 's32[1]{0}', space=sflag, size = 0x4, scoped, tag = 'scoped memory for tpu_custom_call.1']
    #allocation6 [shape = 's32[1]{0}', space=sflag, size = 0x4, scoped, tag = 'scoped memory for tpu_custom_call.1']
    #allocation7 [shape = 'u8[16384]{0}', space=vmem, size = 0x4000, scoped, tag = 'input window, operand 1, single buffered']
    #allocation8 [shape = 's32[1]{0}', space=sflag, size = 0x4, scoped, tag = 'scoped memory for tpu_custom_call.1']
    #allocation9 [shape = 'u8[8192]{0}', space=vmem, size = 0x2000, scoped, tag = 'output window, operand 0, single buffered']
    #allocation10 [shape = 'u8[1024]{0}', space=vmem, size = 0x400, scoped, tag = 'output window, operand 1, single buffered']
    #allocation11 [shape = 's32[1]{0}', space=sflag, size = 0x4, scoped, tag = 'scoped memory for tpu_custom_call.1']
    %9 = vsyncpa [#allocation5], 0
    %10 = vsyncpa [#allocation8], 0
    %11 = vsyncpa [#allocation6], 0
    %12 = vsyncpa [#allocation11], 0
    // Predicated region
    $region2: #{tpu_custom_call.1} parent=1 // pred_check
      _
    $region3: #{tpu_custom_call.1} parent=1 // pred_check_branch
      %14 = sbr.rel (0) target = $region5
    $region4: #{tpu_custom_call.1} parent=1 // pred_region
      %s16 = ssub.s32 256, 256
      %17 = vsyncadd [#allocation5], %s16
      %s18 = sshll.u32 [#allocation4], 4
      %s19 = int_to_ptr.vmem [resolvable:$true] %s18
      %24 = dma.hbm_to_vmem [thread:$0]  %s0, 256, %s19, [#allocation5], 128, 128, 8
    $region5: #{tpu_custom_call.1} parent=1 // pred_fallthru
      _
    // Predicated region
    $region6: #{tpu_custom_call.1} parent=1 // pred_check
      _
    $region7: #{tpu_custom_call.1} parent=1 // pred_check_branch
      %26 = sbr.rel (0) target = $region9
    $region8: #{tpu_custom_call.1} parent=1 // pred_region
      %s28 = ssub.s32 512, 512
      %29 = vsyncadd [#allocation8], %s28
      %s30 = sshll.u32 [#allocation7], 4
      %s31 = int_to_ptr.vmem [resolvable:$true] %s30
      %36 = dma.hbm_to_vmem [thread:$0]  %s1, 512, %s31, [#allocation8], 128, 128, 8
    $region9: #{tpu_custom_call.1} parent=1 // pred_fallthru
      _
    // Predicated region
    $region10: #{tpu_custom_call.1} parent=1 // pred_check
      _
    $region11: #{tpu_custom_call.1} parent=1 // pred_check_branch
      %38 = sbr.rel (0) target = $region13
    $region12: #{tpu_custom_call.1} parent=1 // pred_region
      %39 = dma.done [#allocation5], 256
    $region13: #{tpu_custom_call.1} parent=1 // pred_fallthru
      _
    // Predicated region
    $region14: #{tpu_custom_call.1} parent=1 // pred_check
      _
    $region15: #{tpu_custom_call.1} parent=1 // pred_check_branch
      %41 = sbr.rel (0) target = $region17
    $region16: #{tpu_custom_call.1} parent=1 // pred_region
      %42 = dma.done [#allocation8], 512
    $region17: #{tpu_custom_call.1} parent=1 // pred_fallthru
      _
    %p43 = scmp.eq.s32.totalorder 0, 0
    // Predicated region
    $region18: #{tpu_custom_call.1} parent=1 // pred_check
      %p44 = pneg %p43
    $region19: #{tpu_custom_call.1} parent=1 // pred_check_branch
      %46 = sbr.rel (%p44) target = $region21
    $region20: #{tpu_custom_call.1} parent=1 // pred_region
      %vm47 = vcmask 254976
      %48 = vst.msk [vmem:[#allocation2] sm:$0x3] %vm47, 0.0
      %49 = vst.msk [vmem:[#allocation3] sm:$0x3] %vm47, 0.0
    $region21: #{tpu_custom_call.1} parent=1 // pred_fallthru
      _
    %v50 = vld [vmem:[#allocation7] sm:$0xff]
    %v51 = vld [vmem:[#allocation7 + $0x8] sm:$0xff]
    %v52 = vld [vmem:[#allocation7 + $0x10] sm:$0xff]
    %v53 = vld [vmem:[#allocation7 + $0x18] sm:$0xff]
    %v54 = vld [vmem:[#allocation2] sm:$0x3]
    %v55 = vld [vmem:[#allocation3] sm:$0x3]
    %v56 = vld [vmem:[#allocation4] sm:$0x1]
    %v57 = vld [vmem:[#allocation4 + $0x8] sm:$0x1]
    %v60 = vrot.slane %v57, 7
    %vm61 = vcmask 1041409
    %v62 = vsel %vm61, %v60, %v56
    %vm64 = vcmask 261120
    %v66 = vsel %vm64, %v54, 0
    %68 = vmatprep.subr.mxu0 0.0
    %69 = vmatpush1.msra.mxu0 0.0
    %70 = vmatprep.subr.mxu0 0.0
    %71 = vmatpush1.msra.mxu0 0.0
    %72 = vmatprep.subr.mxu0 0.0
    %73 = vmatpush1.msra.mxu0 0.0
    %74 = vmatprep.subr.mxu0 0.0
    %75 = vmatpush1.msra.mxu0 0.0
    %76 = vmatprep.subr.mxu0 0.0
    %77 = vmatpush1.msra.mxu0 0.0
    %78 = vmatprep.subr.mxu0 0.0
    %79 = vmatpush1.msra.mxu0 0.0
    %80 = vmatprep.subr.mxu0 0.0
    %81 = vmatpush1.msra.mxu0 0.0
    %82 = vmatprep.subr.mxu0 0.0
    %83 = vmatpush1.msra.mxu0 0.0
    %84 = vmatprep.subr.mxu0 0.0
    %85 = vmatpush1.msra.mxu0 0.0
    %86 = vmatprep.subr.mxu0 0.0
    %87 = vmatpush1.msra.mxu0 0.0
    %88 = vmatprep.subr.mxu0 0.0
    %89 = vmatpush1.msra.mxu0 0.0
    %90 = vmatprep.subr.mxu0 0.0
    %91 = vmatpush1.msra.mxu0 0.0
    %92 = vmatprep.subr.mxu0 0.0
    %93 = vmatpush1.msra.mxu0 %v53
    %94 = vmatprep.subr.mxu0 0.0
    %95 = vmatpush1.msra.mxu0 %v52
    %96 = vmatprep.subr.mxu0 0.0
    %97 = vmatpush1.msra.mxu0 %v51
    %98 = vmatprep.subr.mxu0 0.0
    %99 = vmatpush1.msra.mxu0 %v50
    %100 = vmatprep.subr.mxu0 0.0
    %101 = vmatpush2.msra.mxu0 0.0
    %102 = vmatprep.subr.mxu0 0.0
    %103 = vmatpush2.msra.mxu0 0.0
    %104 = vmatprep.subr.mxu0 0.0
    %105 = vmatpush2.msra.mxu0 0.0
    %106 = vmatprep.subr.mxu0 0.0
    %107 = vmatpush2.msra.mxu0 0.0
    %108 = vmatprep.subr.mxu0 0.0
    %109 = vmatpush2.msra.mxu0 0.0
    %110 = vmatprep.subr.mxu0 0.0
    %111 = vmatpush2.msra.mxu0 0.0
    %112 = vmatprep.subr.mxu0 0.0
    %113 = vmatpush2.msra.mxu0 0.0
    %114 = vmatprep.subr.mxu0 0.0
    %115 = vmatpush2.msra.mxu0 0.0
    %116 = vmatprep.subr.mxu0 0.0
    %117 = vmatpush2.msra.mxu0 0.0
    %118 = vmatprep.subr.mxu0 0.0
    %119 = vmatpush2.msra.mxu0 0.0
    %120 = vmatprep.subr.mxu0 0.0
    %121 = vmatpush2.msra.mxu0 0.0
    %122 = vmatprep.subr.mxu0 0.0
    %123 = vmatpush2.msra.mxu0 0.0
    %124 = vmatprep.subr.mxu0 0.0
    %125 = vmatpush2.msra.mxu0 0.0
    %126 = vmatprep.subr.mxu0 0.0
    %127 = vmatpush2.msra.mxu0 0.0
    %128 = vmatprep.subr.mxu0 0.0
    %129 = vmatpush2.msra.mxu0 0.0
    %130 = vmatprep.subr.mxu0 0.0
    %131 = vmatpush2.msra.mxu0 0.0
    %132 = vmatprep.mubr.f32.mxu0 0.0
    %133 = vmatmul.mubr.f32.gmra.mxu0 %v66
    %v134 = vpop.f32.mrf.mxu0
    %v135 = vadd.f32 %v62, %v134
    %v136 = vpop.f32.mrf.mxu0
    %137 = vdwg.mxu0
    %v138 = vxor.u32 %v135, 2147483648
    %v139 = vmul.f32 %v138, 1.442695
    %v140 = vpow.pop %v139
    %v141 = vadd.f32 %v140, 1.0
    %v142 = vrcp.pop %v141
    %v143 = vmul.f32 1.0, %v142
    %v144 = vtanh.pop %v135
    %146 = vrot.lane.b32.xlu0 %v55, 32
    %v147 = vpop.permute.xlu0 %146
    %v149 = vmul.f32 %v143, %v147
    %151 = vrot.lane.b32.xlu0 %v144, 64
    %v152 = vpop.permute.xlu0 %151
    %v154 = vmul.f32 %v143, %v152
    %156 = vrot.lane.b32.xlu0 %v154, 32
    %v157 = vpop.permute.xlu0 %156
    %v159 = vadd.f32 %v149, %v157
    %v160 = vtanh.pop %v159
    %162 = vrot.lane.b32.xlu0 %v160, 64
    %v163 = vpop.permute.xlu0 %162
    %v165 = vmul.f32 %v143, %v163
    %v168 = vunpack.c.l.s4 1966171168
    %v169 = vunpack.c.0.s8 %v168
    %v170 = vlaneseq
    %v171 = vshrl.u32 %v170, 7
    %v172 = vsub.s32 %v169, %v171
    %v173 = vrot.slane %v165, %v172
    %v174 = vcombine.high %v173, %v173
    %v176 = vunpack.c.l.s4 1966171168
    %v177 = vunpack.c.0.s8 %v176
    %v178 = vlaneseq
    %v179 = vshrl.u32 %v178, 7
    %v180 = vsub.s32 %v177, %v179
    %v181 = vrot.slane %v173, %v180
    %v183 = vunpack.c.l.s4 1966171168
    %v184 = vunpack.c.0.s8 %v183
    %v185 = vlaneseq
    %v186 = vshrl.u32 %v185, 7
    %v187 = vsub.s32 %v184, %v186
    %v188 = vrot.slane %v174, %v187
    %v189 = vlaneseq
    %v190 = vshrl.u32 %v189, 7
    %v191 = vsub.s32 0, %v190
    %v192 = vrot.slane %v181, %v191
    %v193 = vlaneseq
    %v194 = vshrl.u32 %v193, 7
    %v195 = vsub.s32 0, %v194
    %v196 = vrot.slane %v188, %v195
    %197 = vrot.lane.b32.xlu0 %v192, 32
    %v198 = vpop.permute.xlu0 %197
    %199 = vrot.lane.b32.xlu0 %v196, 32
    %v200 = vpop.permute.xlu0 %199
    %vm203 = vcmask 253952
    %204 = vst.msk [vmem:[#allocation9] sm:$0x1] %vm203, %v198
    %205 = vst.msk [vmem:[#allocation9 + $0x8] sm:$0x1] %vm203, %v200
    %v206 = vld [vmem:[#allocation4 + $0x1] sm:$0x1]
    %v207 = vld [vmem:[#allocation4 + $0x9] sm:$0x1]
    %208 = vrot.lane.b32.xlu0 %v165, 32
    %v209 = vpop.permute.xlu0 %208
    %v212 = vrot.slane %v207, 7
    %v213 = vsel %vm61, %v212, %v206
    %v215 = vsel %vm64, %v209, 0
    %217 = vmatprep.subr.mxu0 0.0
    %218 = vmatpush1.msra.mxu0 0.0
    %219 = vmatprep.subr.mxu0 0.0
    %220 = vmatpush1.msra.mxu0 0.0
    %221 = vmatprep.subr.mxu0 0.0
    %222 = vmatpush1.msra.mxu0 0.0
    %223 = vmatprep.subr.mxu0 0.0
    %224 = vmatpush1.msra.mxu0 0.0
    %225 = vmatprep.subr.mxu0 0.0
    %226 = vmatpush1.msra.mxu0 0.0
    %227 = vmatprep.subr.mxu0 0.0
    %228 = vmatpush1.msra.mxu0 0.0
    %229 = vmatprep.subr.mxu0 0.0
    %230 = vmatpush1.msra.mxu0 0.0
    %231 = vmatprep.subr.mxu0 0.0
    %232 = vmatpush1.msra.mxu0 0.0
    %233 = vmatprep.subr.mxu0 0.0
    %234 = vmatpush1.msra.mxu0 0.0
    %235 = vmatprep.subr.mxu0 0.0
    %236 = vmatpush1.msra.mxu0 0.0
    %237 = vmatprep.subr.mxu0 0.0
    %238 = vmatpush1.msra.mxu0 0.0
    %239 = vmatprep.subr.mxu0 0.0
    %240 = vmatpush1.msra.mxu0 0.0
    %241 = vmatprep.subr.mxu0 0.0
    %242 = vmatpush1.msra.mxu0 %v53
    %243 = vmatprep.subr.mxu0 0.0
    %244 = vmatpush1.msra.mxu0 %v52
    %245 = vmatprep.subr.mxu0 0.0
    %246 = vmatpush1.msra.mxu0 %v51
    %247 = vmatprep.subr.mxu0 0.0
    %248 = vmatpush1.msra.mxu0 %v50
    %249 = vmatprep.subr.mxu0 0.0
    %250 = vmatpush2.msra.mxu0 0.0
    %251 = vmatprep.subr.mxu0 0.0
    %252 = vmatpush2.msra.mxu0 0.0
    %253 = vmatprep.subr.mxu0 0.0
    %254 = vmatpush2.msra.mxu0 0.0
    %255 = vmatprep.subr.mxu0 0.0
    %256 = vmatpush2.msra.mxu0 0.0
    %257 = vmatprep.subr.mxu0 0.0
    %258 = vmatpush2.msra.mxu0 0.0
    %259 = vmatprep.subr.mxu0 0.0
    %260 = vmatpush2.msra.mxu0 0.0
    %261 = vmatprep.subr.mxu0 0.0
    %262 = vmatpush2.msra.mxu0 0.0
    %263 = vmatprep.subr.mxu0 0.0
    %264 = vmatpush2.msra.mxu0 0.0
    %265 = vmatprep.subr.mxu0 0.0
    %266 = vmatpush2.msra.mxu0 0.0
    %267 = vmatprep.subr.mxu0 0.0
    %268 = vmatpush2.msra.mxu0 0.0
    %269 = vmatprep.subr.mxu0 0.0
    %270 = vmatpush2.msra.mxu0 0.0
    %271 = vmatprep.subr.mxu0 0.0
    %272 = vmatpush2.msra.mxu0 0.0
    %273 = vmatprep.subr.mxu0 0.0
    %274 = vmatpush2.msra.mxu0 0.0
    %275 = vmatprep.subr.mxu0 0.0
    %276 = vmatpush2.msra.mxu0 0.0
    %277 = vmatprep.subr.mxu0 0.0
    %278 = vmatpush2.msra.mxu0 0.0
    %279 = vmatprep.subr.mxu0 0.0
    %280 = vmatpush2.msra.mxu0 0.0
    %281 = vmatprep.mubr.f32.mxu0 0.0
    %282 = vmatmul.mubr.f32.gmra.mxu0 %v215
    %v283 = vpop.f32.mrf.mxu0
    %v284 = vadd.f32 %v213, %v283
    %v285 = vpop.f32.mrf.mxu0
    %286 = vdwg.mxu0
    %v287 = vxor.u32 %v284, 2147483648
    %v288 = vmul.f32 %v287, 1.442695
    %v289 = vpow.pop %v288
    %v290 = vadd.f32 %v289, 1.0
    %v291 = vrcp.pop %v290
    %v292 = vmul.f32 1.0, %v291
    %v293 = vtanh.pop %v284
    %v294 = vmul.f32 %v292, %v159
    %296 = vrot.lane.b32.xlu0 %v293, 64
    %v297 = vpop.permute.xlu0 %296
    %v299 = vmul.f32 %v292, %v297
    %301 = vrot.lane.b32.xlu0 %v299, 32
    %v302 = vpop.permute.xlu0 %301
    %v304 = vadd.f32 %v294, %v302
    %v305 = vtanh.pop %v304
    %307 = vrot.lane.b32.xlu0 %v305, 64
    %v308 = vpop.permute.xlu0 %307
    %v310 = vmul.f32 %v292, %v308
    %v313 = vunpack.c.l.s4 1966171168
    %v314 = vunpack.c.0.s8 %v313
    %v315 = vlaneseq
    %v316 = vshrl.u32 %v315, 7
    %v317 = vsub.s32 %v314, %v316
    %v318 = vrot.slane %v310, %v317
    %v319 = vcombine.high %v318, %v318
    %v321 = vunpack.c.l.s4 1966171168
    %v322 = vunpack.c.0.s8 %v321
    %v323 = vlaneseq
    %v324 = vshrl.u32 %v323, 7
    %v325 = vsub.s32 %v322, %v324
    %v326 = vrot.slane %v318, %v325
    %v328 = vunpack.c.l.s4 1966171168
    %v329 = vunpack.c.0.s8 %v328
    %v330 = vlaneseq
    %v331 = vshrl.u32 %v330, 7
    %v332 = vsub.s32 %v329, %v331
    %v333 = vrot.slane %v319, %v332
    %v334 = vlaneseq
    %v335 = vshrl.u32 %v334, 7
    %v336 = vsub.s32 0, %v335
    %v337 = vrot.slane %v326, %v336
    %v338 = vlaneseq
    %v339 = vshrl.u32 %v338, 7
    %v340 = vsub.s32 0, %v339
    %v341 = vrot.slane %v333, %v340
    %342 = vrot.lane.b32.xlu0 %v337, 32
    %v343 = vpop.permute.xlu0 %342
    %344 = vrot.lane.b32.xlu0 %v341, 32
    %v345 = vpop.permute.xlu0 %344
    %348 = vst.msk [vmem:[#allocation9 + $0x1] sm:$0x1] %vm203, %v343
    %349 = vst.msk [vmem:[#allocation9 + $0x9] sm:$0x1] %vm203, %v345
    %v350 = vld [vmem:[#allocation4 + $0x2] sm:$0x1]
    %v351 = vld [vmem:[#allocation4 + $0xa] sm:$0x1]
    %352 = vrot.lane.b32.xlu0 %v310, 32
    %v353 = vpop.permute.xlu0 %352
    %v356 = vrot.slane %v351, 7
    %v357 = vsel %vm61, %v356, %v350
    %v359 = vsel %vm64, %v353, 0
    %361 = vmatprep.subr.mxu0 0.0
    %362 = vmatpush1.msra.mxu0 0.0
    %363 = vmatprep.subr.mxu0 0.0
    %364 = vmatpush1.msra.mxu0 0.0
    %365 = vmatprep.subr.mxu0 0.0
    %366 = vmatpush1.msra.mxu0 0.0
    %367 = vmatprep.subr.mxu0 0.0
    %368 = vmatpush1.msra.mxu0 0.0
    %369 = vmatprep.subr.mxu0 0.0
    %370 = vmatpush1.msra.mxu0 0.0
    %371 = vmatprep.subr.mxu0 0.0
    %372 = vmatpush1.msra.mxu0 0.0
    %373 = vmatprep.subr.mxu0 0.0
    %374 = vmatpush1.msra.mxu0 0.0
    %375 = vmatprep.subr.mxu0 0.0
    %376 = vmatpush1.msra.mxu0 0.0
    %377 = vmatprep.subr.mxu0 0.0
    %378 = vmatpush1.msra.mxu0 0.0
    %379 = vmatprep.subr.mxu0 0.0
    %380 = vmatpush1.msra.mxu0 0.0
    %381 = vmatprep.subr.mxu0 0.0
    %382 = vmatpush1.msra.mxu0 0.0
    %383 = vmatprep.subr.mxu0 0.0
    %384 = vmatpush1.msra.mxu0 0.0
    %385 = vmatprep.subr.mxu0 0.0
    %386 = vmatpush1.msra.mxu0 %v53
    %387 = vmatprep.subr.mxu0 0.0
    %388 = vmatpush1.msra.mxu0 %v52
    %389 = vmatprep.subr.mxu0 0.0
    %390 = vmatpush1.msra.mxu0 %v51
    %391 = vmatprep.subr.mxu0 0.0
    %392 = vmatpush1.msra.mxu0 %v50
    %393 = vmatprep.subr.mxu0 0.0
    %394 = vmatpush2.msra.mxu0 0.0
    %395 = vmatprep.subr.mxu0 0.0
    %396 = vmatpush2.msra.mxu0 0.0
    %397 = vmatprep.subr.mxu0 0.0
    %398 = vmatpush2.msra.mxu0 0.0
    %399 = vmatprep.subr.mxu0 0.0
    %400 = vmatpush2.msra.mxu0 0.0
    %401 = vmatprep.subr.mxu0 0.0
    %402 = vmatpush2.msra.mxu0 0.0
    %403 = vmatprep.subr.mxu0 0.0
    %404 = vmatpush2.msra.mxu0 0.0
    %405 = vmatprep.subr.mxu0 0.0
    %406 = vmatpush2.msra.mxu0 0.0
    %407 = vmatprep.subr.mxu0 0.0
    %408 = vmatpush2.msra.mxu0 0.0
    %409 = vmatprep.subr.mxu0 0.0
    %410 = vmatpush2.msra.mxu0 0.0
    %411 = vmatprep.subr.mxu0 0.0
    %412 = vmatpush2.msra.mxu0 0.0
    %413 = vmatprep.subr.mxu0 0.0
    %414 = vmatpush2.msra.mxu0 0.0
    %415 = vmatprep.subr.mxu0 0.0
    %416 = vmatpush2.msra.mxu0 0.0
    %417 = vmatprep.subr.mxu0 0.0
    %418 = vmatpush2.msra.mxu0 0.0
    %419 = vmatprep.subr.mxu0 0.0
    %420 = vmatpush2.msra.mxu0 0.0
    %421 = vmatprep.subr.mxu0 0.0
    %422 = vmatpush2.msra.mxu0 0.0
    %423 = vmatprep.subr.mxu0 0.0
    %424 = vmatpush2.msra.mxu0 0.0
    %425 = vmatprep.mubr.f32.mxu0 0.0
    %426 = vmatmul.mubr.f32.gmra.mxu0 %v359
    %v427 = vpop.f32.mrf.mxu0
    %v428 = vadd.f32 %v357, %v427
    %v429 = vpop.f32.mrf.mxu0
    %430 = vdwg.mxu0
    %v431 = vxor.u32 %v428, 2147483648
    %v432 = vmul.f32 %v431, 1.442695
    %v433 = vpow.pop %v432
    %v434 = vadd.f32 %v433, 1.0
    %v435 = vrcp.pop %v434
    %v436 = vmul.f32 1.0, %v435
    %v437 = vtanh.pop %v428
    %v438 = vmul.f32 %v436, %v304
    %440 = vrot.lane.b32.xlu0 %v437, 64
    %v441 = vpop.permute.xlu0 %440
    %v443 = vmul.f32 %v436, %v441
    %445 = vrot.lane.b32.xlu0 %v443, 32
    %v446 = vpop.permute.xlu0 %445
    %v448 = vadd.f32 %v438, %v446
    %v449 = vtanh.pop %v448
    %451 = vrot.lane.b32.xlu0 %v449, 64
    %v452 = vpop.permute.xlu0 %451
    %v454 = vmul.f32 %v436, %v452
    %v457 = vunpack.c.l.s4 1966171168
    %v458 = vunpack.c.0.s8 %v457
    %v459 = vlaneseq
    %v460 = vshrl.u32 %v459, 7
    %v461 = vsub.s32 %v458, %v460
    %v462 = vrot.slane %v454, %v461
    %v463 = vcombine.high %v462, %v462
    %v465 = vunpack.c.l.s4 1966171168
    %v466 = vunpack.c.0.s8 %v465
    %v467 = vlaneseq
    %v468 = vshrl.u32 %v467, 7
    %v469 = vsub.s32 %v466, %v468
    %v470 = vrot.slane %v462, %v469
    %v472 = vunpack.c.l.s4 1966171168
    %v473 = vunpack.c.0.s8 %v472
    %v474 = vlaneseq
    %v475 = vshrl.u32 %v474, 7
    %v476 = vsub.s32 %v473, %v475
    %v477 = vrot.slane %v463, %v476
    %v478 = vlaneseq
    %v479 = vshrl.u32 %v478, 7
    %v480 = vsub.s32 0, %v479
    %v481 = vrot.slane %v470, %v480
    %v482 = vlaneseq
    %v483 = vshrl.u32 %v482, 7
    %v484 = vsub.s32 0, %v483
    %v485 = vrot.slane %v477, %v484
    %486 = vrot.lane.b32.xlu0 %v481, 32
    %v487 = vpop.permute.xlu0 %486
    %488 = vrot.lane.b32.xlu0 %v485, 32
    %v489 = vpop.permute.xlu0 %488
    %492 = vst.msk [vmem:[#allocation9 + $0x2] sm:$0x1] %vm203, %v487
    %493 = vst.msk [vmem:[#allocation9 + $0xa] sm:$0x1] %vm203, %v489
    %v494 = vld [vmem:[#allocation4 + $0x3] sm:$0x1]
    %v495 = vld [vmem:[#allocation4 + $0xb] sm:$0x1]
    %496 = vrot.lane.b32.xlu0 %v454, 32
    %v497 = vpop.permute.xlu0 %496
    %v500 = vrot.slane %v495, 7
    %v501 = vsel %vm61, %v500, %v494
    %v503 = vsel %vm64, %v497, 0
    %505 = vmatprep.subr.mxu0 0.0
    %506 = vmatpush1.msra.mxu0 0.0
    %507 = vmatprep.subr.mxu0 0.0
    %508 = vmatpush1.msra.mxu0 0.0
    %509 = vmatprep.subr.mxu0 0.0
    %510 = vmatpush1.msra.mxu0 0.0
    %511 = vmatprep.subr.mxu0 0.0
    %512 = vmatpush1.msra.mxu0 0.0
    %513 = vmatprep.subr.mxu0 0.0
    %514 = vmatpush1.msra.mxu0 0.0
    %515 = vmatprep.subr.mxu0 0.0
    %516 = vmatpush1.msra.mxu0 0.0
    %517 = vmatprep.subr.mxu0 0.0
    %518 = vmatpush1.msra.mxu0 0.0
    %519 = vmatprep.subr.mxu0 0.0
    %520 = vmatpush1.msra.mxu0 0.0
    %521 = vmatprep.subr.mxu0 0.0
    %522 = vmatpush1.msra.mxu0 0.0
    %523 = vmatprep.subr.mxu0 0.0
    %524 = vmatpush1.msra.mxu0 0.0
    %525 = vmatprep.subr.mxu0 0.0
    %526 = vmatpush1.msra.mxu0 0.0
    %527 = vmatprep.subr.mxu0 0.0
    %528 = vmatpush1.msra.mxu0 0.0
    %529 = vmatprep.subr.mxu0 0.0
    %530 = vmatpush1.msra.mxu0 %v53
    %531 = vmatprep.subr.mxu0 0.0
    %532 = vmatpush1.msra.mxu0 %v52
    %533 = vmatprep.subr.mxu0 0.0
    %534 = vmatpush1.msra.mxu0 %v51
    %535 = vmatprep.subr.mxu0 0.0
    %536 = vmatpush1.msra.mxu0 %v50
    %537 = vmatprep.subr.mxu0 0.0
    %538 = vmatpush2.msra.mxu0 0.0
    %539 = vmatprep.subr.mxu0 0.0
    %540 = vmatpush2.msra.mxu0 0.0
    %541 = vmatprep.subr.mxu0 0.0
    %542 = vmatpush2.msra.mxu0 0.0
    %543 = vmatprep.subr.mxu0 0.0
    %544 = vmatpush2.msra.mxu0 0.0
    %545 = vmatprep.subr.mxu0 0.0
    %546 = vmatpush2.msra.mxu0 0.0
    %547 = vmatprep.subr.mxu0 0.0
    %548 = vmatpush2.msra.mxu0 0.0
    %549 = vmatprep.subr.mxu0 0.0
    %550 = vmatpush2.msra.mxu0 0.0
    %551 = vmatprep.subr.mxu0 0.0
    %552 = vmatpush2.msra.mxu0 0.0
    %553 = vmatprep.subr.mxu0 0.0
    %554 = vmatpush2.msra.mxu0 0.0
    %555 = vmatprep.subr.mxu0 0.0
    %556 = vmatpush2.msra.mxu0 0.0
    %557 = vmatprep.subr.mxu0 0.0
    %558 = vmatpush2.msra.mxu0 0.0
    %559 = vmatprep.subr.mxu0 0.0
    %560 = vmatpush2.msra.mxu0 0.0
    %561 = vmatprep.subr.mxu0 0.0
    %562 = vmatpush2.msra.mxu0 0.0
    %563 = vmatprep.subr.mxu0 0.0
    %564 = vmatpush2.msra.mxu0 0.0
    %565 = vmatprep.subr.mxu0 0.0
    %566 = vmatpush2.msra.mxu0 0.0
    %567 = vmatprep.subr.mxu0 0.0
    %568 = vmatpush2.msra.mxu0 0.0
    %569 = vmatprep.mubr.f32.mxu0 0.0
    %570 = vmatmul.mubr.f32.gmra.mxu0 %v503
    %v571 = vpop.f32.mrf.mxu0
    %v572 = vadd.f32 %v501, %v571
    %v573 = vpop.f32.mrf.mxu0
    %574 = vdwg.mxu0
    %v575 = vxor.u32 %v572, 2147483648
    %v576 = vmul.f32 %v575, 1.442695
    %v577 = vpow.pop %v576
    %v578 = vadd.f32 %v577, 1.0
    %v579 = vrcp.pop %v578
    %v580 = vmul.f32 1.0, %v579
    %v581 = vtanh.pop %v572
    %v582 = vmul.f32 %v580, %v448
    %584 = vrot.lane.b32.xlu0 %v581, 64
    %v585 = vpop.permute.xlu0 %584
    %v587 = vmul.f32 %v580, %v585
    %589 = vrot.lane.b32.xlu0 %v587, 32
    %v590 = vpop.permute.xlu0 %589
    %v592 = vadd.f32 %v582, %v590
    %v593 = vtanh.pop %v592
    %595 = vrot.lane.b32.xlu0 %v593, 64
    %v596 = vpop.permute.xlu0 %595
    %v598 = vmul.f32 %v580, %v596
    %v601 = vunpack.c.l.s4 1966171168
    %v602 = vunpack.c.0.s8 %v601
    %v603 = vlaneseq
    %v604 = vshrl.u32 %v603, 7
    %v605 = vsub.s32 %v602, %v604
    %v606 = vrot.slane %v598, %v605
    %v607 = vcombine.high %v606, %v606
    %v609 = vunpack.c.l.s4 1966171168
    %v610 = vunpack.c.0.s8 %v609
    %v611 = vlaneseq
    %v612 = vshrl.u32 %v611, 7
    %v613 = vsub.s32 %v610, %v612
    %v614 = vrot.slane %v606, %v613
    %v616 = vunpack.c.l.s4 1966171168
    %v617 = vunpack.c.0.s8 %v616
    %v618 = vlaneseq
    %v619 = vshrl.u32 %v618, 7
    %v620 = vsub.s32 %v617, %v619
    %v621 = vrot.slane %v607, %v620
    %v622 = vlaneseq
    %v623 = vshrl.u32 %v622, 7
    %v624 = vsub.s32 0, %v623
    %v625 = vrot.slane %v614, %v624
    %v626 = vlaneseq
    %v627 = vshrl.u32 %v626, 7
    %v628 = vsub.s32 0, %v627
    %v629 = vrot.slane %v621, %v628
    %630 = vrot.lane.b32.xlu0 %v625, 32
    %v631 = vpop.permute.xlu0 %630
    %632 = vrot.lane.b32.xlu0 %v629, 32
    %v633 = vpop.permute.xlu0 %632
    %636 = vst.msk [vmem:[#allocation9 + $0x3] sm:$0x1] %vm203, %v631
    %637 = vst.msk [vmem:[#allocation9 + $0xb] sm:$0x1] %vm203, %v633
    %v638 = vld [vmem:[#allocation4 + $0x4] sm:$0x1]
    %v639 = vld [vmem:[#allocation4 + $0xc] sm:$0x1]
    %640 = vrot.lane.b32.xlu0 %v598, 32
    %v641 = vpop.permute.xlu0 %640
    %v644 = vrot.slane %v639, 7
    %v645 = vsel %vm61, %v644, %v638
    %v647 = vsel %vm64, %v641, 0
    %649 = vmatprep.subr.mxu0 0.0
    %650 = vmatpush1.msra.mxu0 0.0
    %651 = vmatprep.subr.mxu0 0.0
    %652 = vmatpush1.msra.mxu0 0.0
    %653 = vmatprep.subr.mxu0 0.0
    %654 = vmatpush1.msra.mxu0 0.0
    %655 = vmatprep.subr.mxu0 0.0
    %656 = vmatpush1.msra.mxu0 0.0
    %657 = vmatprep.subr.mxu0 0.0
    %658 = vmatpush1.msra.mxu0 0.0
    %659 = vmatprep.subr.mxu0 0.0
    %660 = vmatpush1.msra.mxu0 0.0
    %661 = vmatprep.subr.mxu0 0.0
    %662 = vmatpush1.msra.mxu0 0.0
    %663 = vmatprep.subr.mxu0 0.0
    %664 = vmatpush1.msra.mxu0 0.0
    %665 = vmatprep.subr.mxu0 0.0
    %666 = vmatpush1.msra.mxu0 0.0
    %667 = vmatprep.subr.mxu0 0.0
    %668 = vmatpush1.msra.mxu0 0.0
    %669 = vmatprep.subr.mxu0 0.0
    %670 = vmatpush1.msra.mxu0 0.0
    %671 = vmatprep.subr.mxu0 0.0
    %672 = vmatpush1.msra.mxu0 0.0
    %673 = vmatprep.subr.mxu0 0.0
    %674 = vmatpush1.msra.mxu0 %v53
    %675 = vmatprep.subr.mxu0 0.0
    %676 = vmatpush1.msra.mxu0 %v52
    %677 = vmatprep.subr.mxu0 0.0
    %678 = vmatpush1.msra.mxu0 %v51
    %679 = vmatprep.subr.mxu0 0.0
    %680 = vmatpush1.msra.mxu0 %v50
    %681 = vmatprep.subr.mxu0 0.0
    %682 = vmatpush2.msra.mxu0 0.0
    %683 = vmatprep.subr.mxu0 0.0
    %684 = vmatpush2.msra.mxu0 0.0
    %685 = vmatprep.subr.mxu0 0.0
    %686 = vmatpush2.msra.mxu0 0.0
    %687 = vmatprep.subr.mxu0 0.0
    %688 = vmatpush2.msra.mxu0 0.0
    %689 = vmatprep.subr.mxu0 0.0
    %690 = vmatpush2.msra.mxu0 0.0
    %691 = vmatprep.subr.mxu0 0.0
    %692 = vmatpush2.msra.mxu0 0.0
    %693 = vmatprep.subr.mxu0 0.0
    %694 = vmatpush2.msra.mxu0 0.0
    %695 = vmatprep.subr.mxu0 0.0
    %696 = vmatpush2.msra.mxu0 0.0
    %697 = vmatprep.subr.mxu0 0.0
    %698 = vmatpush2.msra.mxu0 0.0
    %699 = vmatprep.subr.mxu0 0.0
    %700 = vmatpush2.msra.mxu0 0.0
    %701 = vmatprep.subr.mxu0 0.0
    %702 = vmatpush2.msra.mxu0 0.0
    %703 = vmatprep.subr.mxu0 0.0
    %704 = vmatpush2.msra.mxu0 0.0
    %705 = vmatprep.subr.mxu0 0.0
    %706 = vmatpush2.msra.mxu0 0.0
    %707 = vmatprep.subr.mxu0 0.0
    %708 = vmatpush2.msra.mxu0 0.0
    %709 = vmatprep.subr.mxu0 0.0
    %710 = vmatpush2.msra.mxu0 0.0
    %711 = vmatprep.subr.mxu0 0.0
    %712 = vmatpush2.msra.mxu0 0.0
    %713 = vmatprep.mubr.f32.mxu0 0.0
    %714 = vmatmul.mubr.f32.gmra.mxu0 %v647
    %v715 = vpop.f32.mrf.mxu0
    %v716 = vadd.f32 %v645, %v715
    %v717 = vpop.f32.mrf.mxu0
    %718 = vdwg.mxu0
    %v719 = vxor.u32 %v716, 2147483648
    %v720 = vmul.f32 %v719, 1.442695
    %v721 = vpow.pop %v720
    %v722 = vadd.f32 %v721, 1.0
    %v723 = vrcp.pop %v722
    %v724 = vmul.f32 1.0, %v723
    %v725 = vtanh.pop %v716
    %v726 = vmul.f32 %v724, %v592
    %728 = vrot.lane.b32.xlu0 %v725, 64
    %v729 = vpop.permute.xlu0 %728
    %v731 = vmul.f32 %v724, %v729
    %733 = vrot.lane.b32.xlu0 %v731, 32
    %v734 = vpop.permute.xlu0 %733
    %v736 = vadd.f32 %v726, %v734
    %v737 = vtanh.pop %v736
    %739 = vrot.lane.b32.xlu0 %v737, 64
    %v740 = vpop.permute.xlu0 %739
    %v742 = vmul.f32 %v724, %v740
    %v745 = vunpack.c.l.s4 1966171168
    %v746 = vunpack.c.0.s8 %v745
    %v747 = vlaneseq
    %v748 = vshrl.u32 %v747, 7
    %v749 = vsub.s32 %v746, %v748
    %v750 = vrot.slane %v742, %v749
    %v751 = vcombine.high %v750, %v750
    %v753 = vunpack.c.l.s4 1966171168
    %v754 = vunpack.c.0.s8 %v753
    %v755 = vlaneseq
    %v756 = vshrl.u32 %v755, 7
    %v757 = vsub.s32 %v754, %v756
    %v758 = vrot.slane %v750, %v757
    %v760 = vunpack.c.l.s4 1966171168
    %v761 = vunpack.c.0.s8 %v760
    %v762 = vlaneseq
    %v763 = vshrl.u32 %v762, 7
    %v764 = vsub.s32 %v761, %v763
    %v765 = vrot.slane %v751, %v764
    %v766 = vlaneseq
    %v767 = vshrl.u32 %v766, 7
    %v768 = vsub.s32 0, %v767
    %v769 = vrot.slane %v758, %v768
    %v770 = vlaneseq
    %v771 = vshrl.u32 %v770, 7
    %v772 = vsub.s32 0, %v771
    %v773 = vrot.slane %v765, %v772
    %774 = vrot.lane.b32.xlu0 %v769, 32
    %v775 = vpop.permute.xlu0 %774
    %776 = vrot.lane.b32.xlu0 %v773, 32
    %v777 = vpop.permute.xlu0 %776
    %780 = vst.msk [vmem:[#allocation9 + $0x4] sm:$0x1] %vm203, %v775
    %781 = vst.msk [vmem:[#allocation9 + $0xc] sm:$0x1] %vm203, %v777
    %v782 = vld [vmem:[#allocation4 + $0x5] sm:$0x1]
    %v783 = vld [vmem:[#allocation4 + $0xd] sm:$0x1]
    %784 = vrot.lane.b32.xlu0 %v742, 32
    %v785 = vpop.permute.xlu0 %784
    %v788 = vrot.slane %v783, 7
    %v789 = vsel %vm61, %v788, %v782
    %v791 = vsel %vm64, %v785, 0
    %793 = vmatprep.subr.mxu0 0.0
    %794 = vmatpush1.msra.mxu0 0.0
    %795 = vmatprep.subr.mxu0 0.0
    %796 = vmatpush1.msra.mxu0 0.0
    %797 = vmatprep.subr.mxu0 0.0
    %798 = vmatpush1.msra.mxu0 0.0
    %799 = vmatprep.subr.mxu0 0.0
    %800 = vmatpush1.msra.mxu0 0.0
    %801 = vmatprep.subr.mxu0 0.0
    %802 = vmatpush1.msra.mxu0 0.0
    %803 = vmatprep.subr.mxu0 0.0
    %804 = vmatpush1.msra.mxu0 0.0
    %805 = vmatprep.subr.mxu0 0.0
    %806 = vmatpush1.msra.mxu0 0.0
    %807 = vmatprep.subr.mxu0 0.0
    %808 = vmatpush1.msra.mxu0 0.0
    %809 = vmatprep.subr.mxu0 0.0
    %810 = vmatpush1.msra.mxu0 0.0
    %811 = vmatprep.subr.mxu0 0.0
    %812 = vmatpush1.msra.mxu0 0.0
    %813 = vmatprep.subr.mxu0 0.0
    %814 = vmatpush1.msra.mxu0 0.0
    %815 = vmatprep.subr.mxu0 0.0
    %816 = vmatpush1.msra.mxu0 0.0
    %817 = vmatprep.subr.mxu0 0.0
    %818 = vmatpush1.msra.mxu0 %v53
    %819 = vmatprep.subr.mxu0 0.0
    %820 = vmatpush1.msra.mxu0 %v52
    %821 = vmatprep.subr.mxu0 0.0
    %822 = vmatpush1.msra.mxu0 %v51
    %823 = vmatprep.subr.mxu0 0.0
    %824 = vmatpush1.msra.mxu0 %v50
    %825 = vmatprep.subr.mxu0 0.0
    %826 = vmatpush2.msra.mxu0 0.0
    %827 = vmatprep.subr.mxu0 0.0
    %828 = vmatpush2.msra.mxu0 0.0
    %829 = vmatprep.subr.mxu0 0.0
    %830 = vmatpush2.msra.mxu0 0.0
    %831 = vmatprep.subr.mxu0 0.0
    %832 = vmatpush2.msra.mxu0 0.0
    %833 = vmatprep.subr.mxu0 0.0
    %834 = vmatpush2.msra.mxu0 0.0
    %835 = vmatprep.subr.mxu0 0.0
    %836 = vmatpush2.msra.mxu0 0.0
    %837 = vmatprep.subr.mxu0 0.0
    %838 = vmatpush2.msra.mxu0 0.0
    %839 = vmatprep.subr.mxu0 0.0
    %840 = vmatpush2.msra.mxu0 0.0
    %841 = vmatprep.subr.mxu0 0.0
    %842 = vmatpush2.msra.mxu0 0.0
    %843 = vmatprep.subr.mxu0 0.0
    %844 = vmatpush2.msra.mxu0 0.0
    %845 = vmatprep.subr.mxu0 0.0
    %846 = vmatpush2.msra.mxu0 0.0
    %847 = vmatprep.subr.mxu0 0.0
    %848 = vmatpush2.msra.mxu0 0.0
    %849 = vmatprep.subr.mxu0 0.0
    %850 = vmatpush2.msra.mxu0 0.0
    %851 = vmatprep.subr.mxu0 0.0
    %852 = vmatpush2.msra.mxu0 0.0
    %853 = vmatprep.subr.mxu0 0.0
    %854 = vmatpush2.msra.mxu0 0.0
    %855 = vmatprep.subr.mxu0 0.0
    %856 = vmatpush2.msra.mxu0 0.0
    %857 = vmatprep.mubr.f32.mxu0 0.0
    %858 = vmatmul.mubr.f32.gmra.mxu0 %v791
    %v859 = vpop.f32.mrf.mxu0
    %v860 = vadd.f32 %v789, %v859
    %v861 = vpop.f32.mrf.mxu0
    %862 = vdwg.mxu0
    %v863 = vxor.u32 %v860, 2147483648
    %v864 = vmul.f32 %v863, 1.442695
    %v865 = vpow.pop %v864
    %v866 = vadd.f32 %v865, 1.0
    %v867 = vrcp.pop %v866
    %v868 = vmul.f32 1.0, %v867
    %v869 = vtanh.pop %v860
    %v870 = vmul.f32 %v868, %v736
    %872 = vrot.lane.b32.xlu0 %v869, 64
    %v873 = vpop.permute.xlu0 %872
    %v875 = vmul.f32 %v868, %v873
    %877 = vrot.lane.b32.xlu0 %v875, 32
    %v878 = vpop.permute.xlu0 %877
    %v880 = vadd.f32 %v870, %v878
    %v881 = vtanh.pop %v880
    %883 = vrot.lane.b32.xlu0 %v881, 64
    %v884 = vpop.permute.xlu0 %883
    %v886 = vmul.f32 %v868, %v884
    %v889 = vunpack.c.l.s4 1966171168
    %v890 = vunpack.c.0.s8 %v889
    %v891 = vlaneseq
    %v892 = vshrl.u32 %v891, 7
    %v893 = vsub.s32 %v890, %v892
    %v894 = vrot.slane %v886, %v893
    %v895 = vcombine.high %v894, %v894
    %v897 = vunpack.c.l.s4 1966171168
    %v898 = vunpack.c.0.s8 %v897
    %v899 = vlaneseq
    %v900 = vshrl.u32 %v899, 7
    %v901 = vsub.s32 %v898, %v900
    %v902 = vrot.slane %v894, %v901
    %v904 = vunpack.c.l.s4 1966171168
    %v905 = vunpack.c.0.s8 %v904
    %v906 = vlaneseq
    %v907 = vshrl.u32 %v906, 7
    %v908 = vsub.s32 %v905, %v907
    %v909 = vrot.slane %v895, %v908
    %v910 = vlaneseq
    %v911 = vshrl.u32 %v910, 7
    %v912 = vsub.s32 0, %v911
    %v913 = vrot.slane %v902, %v912
    %v914 = vlaneseq
    %v915 = vshrl.u32 %v914, 7
    %v916 = vsub.s32 0, %v915
    %v917 = vrot.slane %v909, %v916
    %918 = vrot.lane.b32.xlu0 %v913, 32
    %v919 = vpop.permute.xlu0 %918
    %920 = vrot.lane.b32.xlu0 %v917, 32
    %v921 = vpop.permute.xlu0 %920
    %924 = vst.msk [vmem:[#allocation9 + $0x5] sm:$0x1] %vm203, %v919
    %925 = vst.msk [vmem:[#allocation9 + $0xd] sm:$0x1] %vm203, %v921
    %v926 = vld [vmem:[#allocation4 + $0x6] sm:$0x1]
    %v927 = vld [vmem:[#allocation4 + $0xe] sm:$0x1]
    %928 = vrot.lane.b32.xlu0 %v886, 32
    %v929 = vpop.permute.xlu0 %928
    %v932 = vrot.slane %v927, 7
    %v933 = vsel %vm61, %v932, %v926
    %v935 = vsel %vm64, %v929, 0
    %937 = vmatprep.subr.mxu0 0.0
    %938 = vmatpush1.msra.mxu0 0.0
    %939 = vmatprep.subr.mxu0 0.0
    %940 = vmatpush1.msra.mxu0 0.0
    %941 = vmatprep.subr.mxu0 0.0
    %942 = vmatpush1.msra.mxu0 0.0
    %943 = vmatprep.subr.mxu0 0.0
    %944 = vmatpush1.msra.mxu0 0.0
    %945 = vmatprep.subr.mxu0 0.0
    %946 = vmatpush1.msra.mxu0 0.0
    %947 = vmatprep.subr.mxu0 0.0
    %948 = vmatpush1.msra.mxu0 0.0
    %949 = vmatprep.subr.mxu0 0.0
    %950 = vmatpush1.msra.mxu0 0.0
    %951 = vmatprep.subr.mxu0 0.0
    %952 = vmatpush1.msra.mxu0 0.0
    %953 = vmatprep.subr.mxu0 0.0
    %954 = vmatpush1.msra.mxu0 0.0
    %955 = vmatprep.subr.mxu0 0.0
    %956 = vmatpush1.msra.mxu0 0.0
    %957 = vmatprep.subr.mxu0 0.0
    %958 = vmatpush1.msra.mxu0 0.0
    %959 = vmatprep.subr.mxu0 0.0
    %960 = vmatpush1.msra.mxu0 0.0
    %961 = vmatprep.subr.mxu0 0.0
    %962 = vmatpush1.msra.mxu0 %v53
    %963 = vmatprep.subr.mxu0 0.0
    %964 = vmatpush1.msra.mxu0 %v52
    %965 = vmatprep.subr.mxu0 0.0
    %966 = vmatpush1.msra.mxu0 %v51
    %967 = vmatprep.subr.mxu0 0.0
    %968 = vmatpush1.msra.mxu0 %v50
    %969 = vmatprep.subr.mxu0 0.0
    %970 = vmatpush2.msra.mxu0 0.0
    %971 = vmatprep.subr.mxu0 0.0
    %972 = vmatpush2.msra.mxu0 0.0
    %973 = vmatprep.subr.mxu0 0.0
    %974 = vmatpush2.msra.mxu0 0.0
    %975 = vmatprep.subr.mxu0 0.0
    %976 = vmatpush2.msra.mxu0 0.0
    %977 = vmatprep.subr.mxu0 0.0
    %978 = vmatpush2.msra.mxu0 0.0
    %979 = vmatprep.subr.mxu0 0.0
    %980 = vmatpush2.msra.mxu0 0.0
    %981 = vmatprep.subr.mxu0 0.0
    %982 = vmatpush2.msra.mxu0 0.0
    %983 = vmatprep.subr.mxu0 0.0
    %984 = vmatpush2.msra.mxu0 0.0
    %985 = vmatprep.subr.mxu0 0.0
    %986 = vmatpush2.msra.mxu0 0.0
    %987 = vmatprep.subr.mxu0 0.0
    %988 = vmatpush2.msra.mxu0 0.0
    %989 = vmatprep.subr.mxu0 0.0
    %990 = vmatpush2.msra.mxu0 0.0
    %991 = vmatprep.subr.mxu0 0.0
    %992 = vmatpush2.msra.mxu0 0.0
    %993 = vmatprep.subr.mxu0 0.0
    %994 = vmatpush2.msra.mxu0 0.0
    %995 = vmatprep.subr.mxu0 0.0
    %996 = vmatpush2.msra.mxu0 0.0
    %997 = vmatprep.subr.mxu0 0.0
    %998 = vmatpush2.msra.mxu0 0.0
    %999 = vmatprep.subr.mxu0 0.0
    %1000 = vmatpush2.msra.mxu0 0.0
    %1001 = vmatprep.mubr.f32.mxu0 0.0
    %1002 = vmatmul.mubr.f32.gmra.mxu0 %v935
    %v1003 = vpop.f32.mrf.mxu0
    %v1004 = vadd.f32 %v933, %v1003
    %v1005 = vpop.f32.mrf.mxu0
    %1006 = vdwg.mxu0
    %v1007 = vxor.u32 %v1004, 2147483648
    %v1008 = vmul.f32 %v1007, 1.442695
    %v1009 = vpow.pop %v1008
    %v1010 = vadd.f32 %v1009, 1.0
    %v1011 = vrcp.pop %v1010
    %v1012 = vmul.f32 1.0, %v1011
    %v1013 = vtanh.pop %v1004
    %v1014 = vmul.f32 %v1012, %v880
    %1016 = vrot.lane.b32.xlu0 %v1013, 64
    %v1017 = vpop.permute.xlu0 %1016
    %v1019 = vmul.f32 %v1012, %v1017
    %1021 = vrot.lane.b32.xlu0 %v1019, 32
    %v1022 = vpop.permute.xlu0 %1021
    %v1024 = vadd.f32 %v1014, %v1022
    %v1025 = vtanh.pop %v1024
    %1027 = vrot.lane.b32.xlu0 %v1025, 64
    %v1028 = vpop.permute.xlu0 %1027
    %v1030 = vmul.f32 %v1012, %v1028
    %v1033 = vunpack.c.l.s4 1966171168
    %v1034 = vunpack.c.0.s8 %v1033
    %v1035 = vlaneseq
    %v1036 = vshrl.u32 %v1035, 7
    %v1037 = vsub.s32 %v1034, %v1036
    %v1038 = vrot.slane %v1030, %v1037
    %v1039 = vcombine.high %v1038, %v1038
    %v1041 = vunpack.c.l.s4 1966171168
    %v1042 = vunpack.c.0.s8 %v1041
    %v1043 = vlaneseq
    %v1044 = vshrl.u32 %v1043, 7
    %v1045 = vsub.s32 %v1042, %v1044
    %v1046 = vrot.slane %v1038, %v1045
    %v1048 = vunpack.c.l.s4 1966171168
    %v1049 = vunpack.c.0.s8 %v1048
    %v1050 = vlaneseq
    %v1051 = vshrl.u32 %v1050, 7
    %v1052 = vsub.s32 %v1049, %v1051
    %v1053 = vrot.slane %v1039, %v1052
    %v1054 = vlaneseq
    %v1055 = vshrl.u32 %v1054, 7
    %v1056 = vsub.s32 0, %v1055
    %v1057 = vrot.slane %v1046, %v1056
    %v1058 = vlaneseq
    %v1059 = vshrl.u32 %v1058, 7
    %v1060 = vsub.s32 0, %v1059
    %v1061 = vrot.slane %v1053, %v1060
    %1062 = vrot.lane.b32.xlu0 %v1057, 32
    %v1063 = vpop.permute.xlu0 %1062
    %1064 = vrot.lane.b32.xlu0 %v1061, 32
    %v1065 = vpop.permute.xlu0 %1064
    %1068 = vst.msk [vmem:[#allocation9 + $0x6] sm:$0x1] %vm203, %v1063
    %1069 = vst.msk [vmem:[#allocation9 + $0xe] sm:$0x1] %vm203, %v1065
    %v1070 = vld [vmem:[#allocation4 + $0x7] sm:$0x1]
    %v1071 = vld [vmem:[#allocation4 + $0xf] sm:$0x1]
    %1072 = vrot.lane.b32.xlu0 %v1030, 32
    %v1073 = vpop.permute.xlu0 %1072
    %v1076 = vrot.slane %v1071, 7
    %v1077 = vsel %vm61, %v1076, %v1070
    %v1079 = vsel %vm64, %v1073, 0
    %1081 = vmatprep.subr.mxu0 0.0
    %1082 = vmatpush1.msra.mxu0 0.0
    %1083 = vmatprep.subr.mxu0 0.0
    %1084 = vmatpush1.msra.mxu0 0.0
    %1085 = vmatprep.subr.mxu0 0.0
    %1086 = vmatpush1.msra.mxu0 0.0
    %1087 = vmatprep.subr.mxu0 0.0
    %1088 = vmatpush1.msra.mxu0 0.0
    %1089 = vmatprep.subr.mxu0 0.0
    %1090 = vmatpush1.msra.mxu0 0.0
    %1091 = vmatprep.subr.mxu0 0.0
    %1092 = vmatpush1.msra.mxu0 0.0
    %1093 = vmatprep.subr.mxu0 0.0
    %1094 = vmatpush1.msra.mxu0 0.0
    %1095 = vmatprep.subr.mxu0 0.0
    %1096 = vmatpush1.msra.mxu0 0.0
    %1097 = vmatprep.subr.mxu0 0.0
    %1098 = vmatpush1.msra.mxu0 0.0
    %1099 = vmatprep.subr.mxu0 0.0
    %1100 = vmatpush1.msra.mxu0 0.0
    %1101 = vmatprep.subr.mxu0 0.0
    %1102 = vmatpush1.msra.mxu0 0.0
    %1103 = vmatprep.subr.mxu0 0.0
    %1104 = vmatpush1.msra.mxu0 0.0
    %1105 = vmatprep.subr.mxu0 0.0
    %1106 = vmatpush1.msra.mxu0 %v53
    %1107 = vmatprep.subr.mxu0 0.0
    %1108 = vmatpush1.msra.mxu0 %v52
    %1109 = vmatprep.subr.mxu0 0.0
    %1110 = vmatpush1.msra.mxu0 %v51
    %1111 = vmatprep.subr.mxu0 0.0
    %1112 = vmatpush1.msra.mxu0 %v50
    %1113 = vmatprep.subr.mxu0 0.0
    %1114 = vmatpush2.msra.mxu0 0.0
    %1115 = vmatprep.subr.mxu0 0.0
    %1116 = vmatpush2.msra.mxu0 0.0
    %1117 = vmatprep.subr.mxu0 0.0
    %1118 = vmatpush2.msra.mxu0 0.0
    %1119 = vmatprep.subr.mxu0 0.0
    %1120 = vmatpush2.msra.mxu0 0.0
    %1121 = vmatprep.subr.mxu0 0.0
    %1122 = vmatpush2.msra.mxu0 0.0
    %1123 = vmatprep.subr.mxu0 0.0
    %1124 = vmatpush2.msra.mxu0 0.0
    %1125 = vmatprep.subr.mxu0 0.0
    %1126 = vmatpush2.msra.mxu0 0.0
    %1127 = vmatprep.subr.mxu0 0.0
    %1128 = vmatpush2.msra.mxu0 0.0
    %1129 = vmatprep.subr.mxu0 0.0
    %1130 = vmatpush2.msra.mxu0 0.0
    %1131 = vmatprep.subr.mxu0 0.0
    %1132 = vmatpush2.msra.mxu0 0.0
    %1133 = vmatprep.subr.mxu0 0.0
    %1134 = vmatpush2.msra.mxu0 0.0
    %1135 = vmatprep.subr.mxu0 0.0
    %1136 = vmatpush2.msra.mxu0 0.0
    %1137 = vmatprep.subr.mxu0 0.0
    %1138 = vmatpush2.msra.mxu0 0.0
    %1139 = vmatprep.subr.mxu0 0.0
    %1140 = vmatpush2.msra.mxu0 0.0
    %1141 = vmatprep.subr.mxu0 0.0
    %1142 = vmatpush2.msra.mxu0 0.0
    %1143 = vmatprep.subr.mxu0 0.0
    %1144 = vmatpush2.msra.mxu0 0.0
    %1145 = vmatprep.mubr.f32.mxu0 0.0
    %1146 = vmatmul.mubr.f32.gmra.mxu0 %v1079
    %v1147 = vpop.f32.mrf.mxu0
    %v1148 = vadd.f32 %v1077, %v1147
    %v1149 = vpop.f32.mrf.mxu0
    %1150 = vdwg.mxu0
    %v1151 = vxor.u32 %v1148, 2147483648
    %v1152 = vmul.f32 %v1151, 1.442695
    %v1153 = vpow.pop %v1152
    %v1154 = vadd.f32 %v1153, 1.0
    %v1155 = vrcp.pop %v1154
    %v1156 = vmul.f32 1.0, %v1155
    %v1157 = vtanh.pop %v1148
    %v1158 = vmul.f32 %v1156, %v1024
    %1160 = vrot.lane.b32.xlu0 %v1157, 64
    %v1161 = vpop.permute.xlu0 %1160
    %v1163 = vmul.f32 %v1156, %v1161
    %1165 = vrot.lane.b32.xlu0 %v1163, 32
    %v1166 = vpop.permute.xlu0 %1165
    %v1168 = vadd.f32 %v1158, %v1166
    %v1169 = vtanh.pop %v1168
    %1171 = vrot.lane.b32.xlu0 %v1169, 64
    %v1172 = vpop.permute.xlu0 %1171
    %v1174 = vmul.f32 %v1156, %v1172
    %v1177 = vunpack.c.l.s4 1966171168
    %v1178 = vunpack.c.0.s8 %v1177
    %v1179 = vlaneseq
    %v1180 = vshrl.u32 %v1179, 7
    %v1181 = vsub.s32 %v1178, %v1180
    %v1182 = vrot.slane %v1174, %v1181
    %v1183 = vcombine.high %v1182, %v1182
    %v1185 = vunpack.c.l.s4 1966171168
    %v1186 = vunpack.c.0.s8 %v1185
    %v1187 = vlaneseq
    %v1188 = vshrl.u32 %v1187, 7
    %v1189 = vsub.s32 %v1186, %v1188
    %v1190 = vrot.slane %v1182, %v1189
    %v1192 = vunpack.c.l.s4 1966171168
    %v1193 = vunpack.c.0.s8 %v1192
    %v1194 = vlaneseq
    %v1195 = vshrl.u32 %v1194, 7
    %v1196 = vsub.s32 %v1193, %v1195
    %v1197 = vrot.slane %v1183, %v1196
    %v1198 = vlaneseq
    %v1199 = vshrl.u32 %v1198, 7
    %v1200 = vsub.s32 0, %v1199
    %v1201 = vrot.slane %v1190, %v1200
    %v1202 = vlaneseq
    %v1203 = vshrl.u32 %v1202, 7
    %v1204 = vsub.s32 0, %v1203
    %v1205 = vrot.slane %v1197, %v1204
    %1206 = vrot.lane.b32.xlu0 %v1201, 32
    %v1207 = vpop.permute.xlu0 %1206
    %1208 = vrot.lane.b32.xlu0 %v1205, 32
    %v1209 = vpop.permute.xlu0 %1208
    %1212 = vst.msk [vmem:[#allocation9 + $0x7] sm:$0x1] %vm203, %v1207
    %1213 = vst.msk [vmem:[#allocation9 + $0xf] sm:$0x1] %vm203, %v1209
    %1214 = vrot.lane.b32.xlu0 %v1174, 32
    %v1215 = vpop.permute.xlu0 %1214
    %vm1217 = vcmask 254976
    %1218 = vst.msk [vmem:[#allocation2] sm:$0x3] %vm1217, %v1215
    %1220 = vrot.lane.b32.xlu0 %v1168, 96
    %v1221 = vpop.permute.xlu0 %1220
    %1223 = vst.msk [vmem:[#allocation3] sm:$0x3] %vm1217, %v1221
    // Predicated region
    $region22: #{tpu_custom_call.1} parent=1 // pred_check
      %p1224 = pneg %p43
    $region23: #{tpu_custom_call.1} parent=1 // pred_check_branch
      %1226 = sbr.rel (%p1224) target = $region25
    $region24: #{tpu_custom_call.1} parent=1 // pred_region
      %1227 = vst.msk [vmem:[#allocation10] sm:$0x3] %vm1217, %v1221
    $region25: #{tpu_custom_call.1} parent=1 // pred_fallthru
      _
    // Predicated region
    $region26: #{tpu_custom_call.1} parent=1 // pred_check
      _
    $region27: #{tpu_custom_call.1} parent=1 // pred_check_branch
      %1229 = sbr.rel (0) target = $region29
    $region28: #{tpu_custom_call.1} parent=1 // pred_region
      %s1231 = ssub.s32 256, 256
      %1232 = vsyncadd [#allocation6], %s1231
      %s1233 = sshll.u32 [#allocation9], 4
      %s1234 = int_to_ptr.vmem [resolvable:$true] %s1233
      %1239 = dma.vmem_to_hbm [thread:$0]  %s1234, 256, %s2, [#allocation6], 128, 128, 8
    $region29: #{tpu_custom_call.1} parent=1 // pred_fallthru
      _
    // Predicated region
    $region30: #{tpu_custom_call.1} parent=1 // pred_check
      _
    $region31: #{tpu_custom_call.1} parent=1 // pred_check_branch
      %1241 = sbr.rel (0) target = $region33
    $region32: #{tpu_custom_call.1} parent=1 // pred_region
      %s1243 = ssub.s32 32, 32
      %1244 = vsyncadd [#allocation11], %s1243
      %s1246 = sshll.u32 [#allocation10], 4
      %s1247 = int_to_ptr.vmem [resolvable:$true] %s1246
      %1249 = dma.vmem_to_hbm [thread:$0]  %s1247, 32, %s3, [#allocation11]
    $region33: #{tpu_custom_call.1} parent=1 // pred_fallthru
      _
    // Predicated region
    $region34: #{tpu_custom_call.1} parent=1 // pred_check
      _
    $region35: #{tpu_custom_call.1} parent=1 // pred_check_branch
      %1251 = sbr.rel (0) target = $region37
    $region36: #{tpu_custom_call.1} parent=1 // pred_region
      %1252 = dma.done [#allocation6], 256
    $region37: #{tpu_custom_call.1} parent=1 // pred_fallthru
      _
    // Predicated region
    $region38: #{tpu_custom_call.1} parent=1 // pred_check
      _
    $region39: #{tpu_custom_call.1} parent=1 // pred_check_branch
      %1254 = sbr.rel (0) target = $region41
    $region40: #{tpu_custom_call.1} parent=1 // pred_region
      %1255 = dma.done [#allocation11], 32
    $region41: #{tpu_custom_call.1} parent=1 // pred_fallthru
      _
    %1256 = vsyncpa [#allocation5], 1
    %1257 = vsyncpa [#allocation8], 1
    %1258 = vsyncpa [#allocation6], 1
    %1259 = vsyncpa [#allocation11], 1

</llo_original>
